<compile_context>
chip_gen: v7x
topology: tpu7x:2x2x1
jax: 0.10.0
libtpu: 0.0.40
codegen_flags: <defaults>
</compile_context>

<pallas_src>
import math
import jax
import jax.numpy as jnp
from jax.experimental import pallas as pl
from jax.experimental.pallas import tpu as pltpu

# ---- problem sizes (small, consistent with the module) -----------------
B = 2          # batch
S = 8          # sequence length
EMBED = 32     # embed_dim
HEADS = 4      # num_heads
FF = 64        # ff_dim
D_HEAD = EMBED // HEADS
LN_EPS = 1e-5  # nn.LayerNorm default


def _layernorm(x, gamma, beta):
    # LayerNorm over last dim (biased variance, like torch)
    mean = jnp.mean(x, axis=-1, keepdims=True)
    var = jnp.mean((x - mean) ** 2, axis=-1, keepdims=True)
    return (x - mean) * jax.lax.rsqrt(var + LN_EPS) * gamma + beta


def _gelu_exact(x):
    # nn.GELU default = exact erf formulation
    return 0.5 * x * (1.0 + jax.lax.erf(x * (1.0 / math.sqrt(2.0))))


def transformer_block_kernel(x_ref, wstack_ref, w1_ref, w2_ref, mask_ref,
                             pslab_ref, o_ref, attn_scr):
    x = x_ref[...]                                   # (B*S, E) = (16, 32)

    # weight slab: [wq, wk, wv, wout] stacked on the leading dim
    wq = wstack_ref[0]
    wk = wstack_ref[1]
    wv = wstack_ref[2]
    wout = wstack_ref[3]

    # Q/K/V projections on all 16 rows at once (in_proj has no bias)
    q = jnp.dot(x, wq, preferred_element_type=jnp.float32)   # (16, 32)
    k = jnp.dot(x, wk, preferred_element_type=jnp.float32)
    v = jnp.dot(x, wv, preferred_element_type=jnp.float32)

    mask = mask_ref[...]                             # (H, S, E) one-hot head lanes
    scale = 1.0 / math.sqrt(D_HEAD)

    # static 2-iteration loop over batch; only the SxS attention core is here
    for b in range(B):
        lo, hi = b * S, (b + 1) * S                  # sublane-tile aligned slices
        qb = q[lo:hi, :]                             # (S, E)
        kb = k[lo:hi, :]
        vb = v[lo:hi, :]

        # Head separation via one-hot lane masks (no lane slicing, no reshape):
        # scores_h = qb @ (kb * mask_h)^T  contracts only head h's lanes.
        qs = jnp.broadcast_to(qb[None, :, :], (HEADS, S, EMBED))
        ks = kb[None, :, :] * mask                   # (H, S, E)
        vs = vb[None, :, :] * mask                   # (H, S, E)

        s_hst = jnp.einsum('hse,hte->hst', qs, ks,
                           preferred_element_type=jnp.float32) * scale   # (H,S,S)
        s_hst = s_hst - jnp.max(s_hst, axis=-1, keepdims=True)
        p = jnp.exp(s_hst)
        p = p * pl.reciprocal(jnp.sum(p, axis=-1, keepdims=True), approx=True)

        heads = jnp.einsum('hst,hte->hse', p, vs,
                           preferred_element_type=jnp.float32)           # (H,S,E)
        # each head's contribution already lives in its own lanes -> just sum
        attn_scr[lo:hi, :] = jnp.sum(heads, axis=0)                       # (S, E)

    # packed small-parameter slab: one row per vector, lane-padded to FF
    bout = pslab_ref[0:1, :EMBED]
    g1 = pslab_ref[1:2, :EMBED]
    bln1 = pslab_ref[2:3, :EMBED]
    bb1 = pslab_ref[3:4, :]                          # (1, FF)
    bb2 = pslab_ref[4:5, :EMBED]
    g2 = pslab_ref[5:6, :EMBED]
    bln2 = pslab_ref[6:7, :EMBED]

    # out projection (with bias) on all 16 rows at once
    proj = jnp.dot(attn_scr[...], wout, preferred_element_type=jnp.float32) + bout

    # residual + LayerNorm1
    x1 = _layernorm(x + proj, g1, bln1)

    # FFN: Linear -> exact GELU -> Linear, flattened over (B*S)
    h1 = jnp.dot(x1, w1_ref[...], preferred_element_type=jnp.float32) + bb1  # (16, FF)
    h1 = _gelu_exact(h1)
    h2 = jnp.dot(h1, w2_ref[...], preferred_element_type=jnp.float32) + bb2  # (16, E)

    # residual + LayerNorm2
    o_ref[...] = _layernorm(x1 + h2, g2, bln2)


def transformer_block(x, params):
    """x: (B, S, E) float32; params: dict of weights in (in, out) layout."""
    # ---- one-time plain-JAX parameter re-packing (layout prep, no compute) ----
    wqkv = params["wqkv"]                                          # (E, 3E)
    wq = wqkv[:, :EMBED]
    wk = wqkv[:, EMBED:2 * EMBED]
    wv = wqkv[:, 2 * EMBED:]
    wstack = jnp.stack([wq, wk, wv, params["wout"]], axis=0)       # (4, E, E)

    # one-hot head-lane mask, materialized to (H, S, E) (4 KiB)
    head_of_lane = jnp.arange(EMBED) // D_HEAD                     # (E,)
    mask2d = (head_of_lane[None, :] ==
              jnp.arange(HEADS)[:, None]).astype(jnp.float32)      # (H, E)
    mask = jnp.broadcast_to(mask2d[:, None, :], (HEADS, S, EMBED))

    # pack the seven small vectors into one (8, FF) slab
    def row(v):
        v = v.reshape(-1)
        return jnp.pad(v, (0, FF - v.shape[0]))
    pslab = jnp.stack([
        row(params["bout"]), row(params["g1"]), row(params["bln1"]),
        row(params["bb1"]), row(params["bb2"]), row(params["g2"]),
        row(params["bln2"]), jnp.zeros((FF,), jnp.float32)], axis=0)  # (8, FF)

    x2d = x.reshape(B * S, EMBED)

    out2d = pl.pallas_call(
        transformer_block_kernel,
        out_shape=jax.ShapeDtypeStruct((B * S, EMBED), jnp.float32),
        scratch_shapes=[pltpu.VMEM((B * S, EMBED), jnp.float32)],
    )(x2d, wstack, params["w1"], params["w2"], mask, pslab)

    return out2d.reshape(B, S, EMBED)


def _reference(x, p):
    """Pure-JAX reference with identical semantics (for a sanity check)."""
    qkv = x @ p["wqkv"]
    q, k, v = jnp.split(qkv, 3, axis=-1)

    def heads(t):  # (B, S, E) -> (B, H, S, Dh)
        return t.reshape(B, S, HEADS, D_HEAD).transpose(0, 2, 1, 3)

    q, k, v = heads(q), heads(k), heads(v)
    w = (q @ jnp.swapaxes(k, -1, -2)) / math.sqrt(D_HEAD)
    w = jax.nn.softmax(w, axis=-1)
    attn = (w @ v).transpose(0, 2, 1, 3).reshape(B, S, EMBED)
    attn = attn @ p["wout"] + p["bout"][0]

    def ln(t, g, b):
        m = t.mean(-1, keepdims=True)
        var = ((t - m) ** 2).mean(-1, keepdims=True)
        return (t - m) / jnp.sqrt(var + LN_EPS) * g[0] + b[0]

    x1 = ln(x + attn, p["g1"], p["bln1"])
    h = x1 @ p["w1"] + p["bb1"][0]
    h = 0.5 * h * (1.0 + jax.lax.erf(h / math.sqrt(2.0)))
    h = h @ p["w2"] + p["bb2"][0]
    return ln(x1 + h, p["g2"], p["bln2"])


if __name__ == "__main__":
    key = jax.random.PRNGKey(0)
    ks = jax.random.split(key, 8)
    sc = 0.05  # small init scale to keep values well-conditioned

    params = {
        "wqkv": jax.random.normal(ks[0], (EMBED, 3 * EMBED), jnp.float32) * sc,
        "wout": jax.random.normal(ks[1], (EMBED, EMBED), jnp.float32) * sc,
        "bout": jax.random.normal(ks[2], (1, EMBED), jnp.float32) * sc,
        "g1":   jnp.ones((1, EMBED), jnp.float32),
        "bln1": jnp.zeros((1, EMBED), jnp.float32),
        "w1":   jax.random.normal(ks[3], (EMBED, FF), jnp.float32) * sc,
        "bb1":  jax.random.normal(ks[4], (1, FF), jnp.float32) * sc,
        "w2":   jax.random.normal(ks[5], (FF, EMBED), jnp.float32) * sc,
        "bb2":  jax.random.normal(ks[6], (1, EMBED), jnp.float32) * sc,
        "g2":   jnp.ones((1, EMBED), jnp.float32),
        "bln2": jnp.zeros((1, EMBED), jnp.float32),
    }

    x = jax.random.normal(ks[7], (B, S, EMBED), jnp.float32)

    out = transformer_block(x, params)
    out = jax.block_until_ready(out)

    ref = _reference(x, params)
    assert out.shape == (B, S, EMBED)
    assert bool(jnp.all(jnp.isfinite(out)))
    # Tolerance accounts for the EUP approximate-reciprocal softmax denominator
    # (exact-f32 math would match to ~1e-6; 2e-3 still catches real bugs).
    assert bool(jnp.allclose(out, ref, atol=2e-3, rtol=2e-3)), "mismatch vs reference"

    print("KERNEL_OK")
</pallas_src>

<mosaic_0001>
module attributes {stable_mosaic.version = 11 : i64} {
  func.func @transformer_block_kernel(%arg0: memref<16x32xf32, #tpu.memory_space<vmem>>, %arg1: memref<4x32x32xf32, #tpu.memory_space<vmem>>, %arg2: memref<32x64xf32, #tpu.memory_space<vmem>>, %arg3: memref<64x32xf32, #tpu.memory_space<vmem>>, %arg4: memref<4x8x32xf32, #tpu.memory_space<vmem>>, %arg5: memref<8x64xf32, #tpu.memory_space<vmem>>, %arg6: memref<16x32xf32, #tpu.memory_space<vmem>>, %arg7: memref<16x32xf32, #tpu.memory_space<vmem>>) attributes {dimension_semantics = [], scalar_prefetch = 0 : i64, scratch_operands = 1 : i64, tpu.core_type = #tpu.core_type<tc>} {
    %c0 = arith.constant 0 : index
    %c0_0 = arith.constant 0 : index
    %0 = vector.load %arg0[%c0, %c0_0] : memref<16x32xf32, #tpu.memory_space<vmem>>, vector<16x32xf32>
    %c0_1 = arith.constant 0 : index
    %c0_2 = arith.constant 0 : index
    %c0_3 = arith.constant 0 : index
    %1 = vector.load %arg1[%c0_1, %c0_2, %c0_3] : memref<4x32x32xf32, #tpu.memory_space<vmem>>, vector<1x32x32xf32>
    %2 = vector.shape_cast %1 : vector<1x32x32xf32> to vector<32x32xf32>
    %c1 = arith.constant 1 : index
    %c0_4 = arith.constant 0 : index
    %c0_5 = arith.constant 0 : index
    %3 = vector.load %arg1[%c1, %c0_4, %c0_5] : memref<4x32x32xf32, #tpu.memory_space<vmem>>, vector<1x32x32xf32>
    %4 = vector.shape_cast %3 : vector<1x32x32xf32> to vector<32x32xf32>
    %c2 = arith.constant 2 : index
    %c0_6 = arith.constant 0 : index
    %c0_7 = arith.constant 0 : index
    %5 = vector.load %arg1[%c2, %c0_6, %c0_7] : memref<4x32x32xf32, #tpu.memory_space<vmem>>, vector<1x32x32xf32>
    %6 = vector.shape_cast %5 : vector<1x32x32xf32> to vector<32x32xf32>
    %c3 = arith.constant 3 : index
    %c0_8 = arith.constant 0 : index
    %c0_9 = arith.constant 0 : index
    %7 = vector.load %arg1[%c3, %c0_8, %c0_9] : memref<4x32x32xf32, #tpu.memory_space<vmem>>, vector<1x32x32xf32>
    %8 = vector.shape_cast %7 : vector<1x32x32xf32> to vector<32x32xf32>
    %cst = arith.constant dense<0.000000e+00> : vector<16x32xf32>
    %9 = tpu.matmul %0, %2, %cst {dimension_numbers = #tpu.dot_dimension_numbers<[1], [0], [0], [1], [0, 0, 1, 1], [], []>} : vector<16x32xf32>, vector<32x32xf32>, vector<16x32xf32> -> vector<16x32xf32>
    %cst_10 = arith.constant dense<0.000000e+00> : vector<16x32xf32>
    %10 = tpu.matmul %0, %4, %cst_10 {dimension_numbers = #tpu.dot_dimension_numbers<[1], [0], [0], [1], [0, 0, 1, 1], [], []>} : vector<16x32xf32>, vector<32x32xf32>, vector<16x32xf32> -> vector<16x32xf32>
    %cst_11 = arith.constant dense<0.000000e+00> : vector<16x32xf32>
    %11 = tpu.matmul %0, %6, %cst_11 {dimension_numbers = #tpu.dot_dimension_numbers<[1], [0], [0], [1], [0, 0, 1, 1], [], []>} : vector<16x32xf32>, vector<32x32xf32>, vector<16x32xf32> -> vector<16x32xf32>
    %c0_12 = arith.constant 0 : index
    %c0_13 = arith.constant 0 : index
    %c0_14 = arith.constant 0 : index
    %12 = vector.load %arg4[%c0_12, %c0_13, %c0_14] : memref<4x8x32xf32, #tpu.memory_space<vmem>>, vector<4x8x32xf32>
    %13 = vector.extract_strided_slice %9 {offsets = [0, 0], sizes = [8, 32], strides = [1, 1]} : vector<16x32xf32> to vector<8x32xf32>
    %14 = vector.extract_strided_slice %10 {offsets = [0, 0], sizes = [8, 32], strides = [1, 1]} : vector<16x32xf32> to vector<8x32xf32>
    %15 = vector.extract_strided_slice %11 {offsets = [0, 0], sizes = [8, 32], strides = [1, 1]} : vector<16x32xf32> to vector<8x32xf32>
    %16 = vector.shape_cast %13 : vector<8x32xf32> to vector<1x8x32xf32>
    %17 = vector.shape_cast %16 : vector<1x8x32xf32> to vector<1x8x32xf32>
    %18 = vector.broadcast %17 : vector<1x8x32xf32> to vector<4x8x32xf32>
    %19 = vector.shape_cast %14 : vector<8x32xf32> to vector<1x8x32xf32>
    %20 = vector.broadcast %19 : vector<1x8x32xf32> to vector<4x8x32xf32>
    %21 = arith.mulf %20, %12 : vector<4x8x32xf32>
    %22 = vector.shape_cast %15 : vector<8x32xf32> to vector<1x8x32xf32>
    %23 = vector.broadcast %22 : vector<1x8x32xf32> to vector<4x8x32xf32>
    %24 = arith.mulf %23, %12 : vector<4x8x32xf32>
    "tpu.trace_start"() <{level = 10 : i32, message = "hse,hte->hst"}> : () -> ()
    %cst_15 = arith.constant dense<0.000000e+00> : vector<4x8x8xf32>
    %25 = tpu.matmul %18, %21, %cst_15 {dimension_numbers = #tpu.dot_dimension_numbers<[2], [2], [1], [1], [0, 0, 0, 1, 1, 1], [0], [0]>} : vector<4x8x32xf32>, vector<4x8x32xf32>, vector<4x8x8xf32> -> vector<4x8x8xf32>
    "tpu.trace_stop"() : () -> ()
    %cst_16 = arith.constant 0.353553385 : f32
    %26 = vector.broadcast %cst_16 : f32 to vector<4x8x8xf32>
    %27 = arith.mulf %25, %26 : vector<4x8x8xf32>
    %cst_17 = arith.constant dense<0xFF800000> : vector<4x8xf32>
    %28 = vector.multi_reduction <maximumf>, %27, %cst_17 [2] : vector<4x8x8xf32> to vector<4x8xf32>
    %29 = vector.shape_cast %28 : vector<4x8xf32> to vector<4x8x1xf32>
    %30 = vector.broadcast %29 : vector<4x8x1xf32> to vector<4x8x8xf32>
    %31 = arith.subf %27, %30 : vector<4x8x8xf32>
    %32 = math.exp %31 : vector<4x8x8xf32>
    %cst_18 = arith.constant dense<0.000000e+00> : vector<4x8xf32>
    %33 = vector.multi_reduction <add>, %32, %cst_18 [2] : vector<4x8x8xf32> to vector<4x8xf32>
    %34 = vector.shape_cast %33 : vector<4x8xf32> to vector<4x8x1xf32>
    %35 = tpu.reciprocal %34 {approx = true} : vector<4x8x1xf32> -> vector<4x8x1xf32>
    %36 = vector.broadcast %35 : vector<4x8x1xf32> to vector<4x8x8xf32>
    %37 = arith.mulf %32, %36 : vector<4x8x8xf32>
    "tpu.trace_start"() <{level = 10 : i32, message = "hst,hte->hse"}> : () -> ()
    %cst_19 = arith.constant dense<0.000000e+00> : vector<4x8x32xf32>
    %38 = tpu.matmul %37, %24, %cst_19 {dimension_numbers = #tpu.dot_dimension_numbers<[2], [1], [1], [2], [0, 0, 0, 1, 1, 2], [0], [0]>} : vector<4x8x8xf32>, vector<4x8x32xf32>, vector<4x8x32xf32> -> vector<4x8x32xf32>
    "tpu.trace_stop"() : () -> ()
    %cst_20 = arith.constant dense<0.000000e+00> : vector<8x32xf32>
    %39 = vector.multi_reduction <add>, %38, %cst_20 [0] : vector<4x8x32xf32> to vector<8x32xf32>
    %c0_21 = arith.constant 0 : index
    %c0_22 = arith.constant 0 : index
    %40 = vector.load %arg7[%c0_21, %c0_22] : memref<16x32xf32, #tpu.memory_space<vmem>>, vector<8x32xf32>
    tpu.vector_store %arg7[%c0_21, %c0_22], %39 {strides = array<i32>} : memref<16x32xf32, #tpu.memory_space<vmem>>, vector<8x32xf32>,
    %41 = vector.extract_strided_slice %9 {offsets = [8, 0], sizes = [8, 32], strides = [1, 1]} : vector<16x32xf32> to vector<8x32xf32>
    %42 = vector.extract_strided_slice %10 {offsets = [8, 0], sizes = [8, 32], strides = [1, 1]} : vector<16x32xf32> to vector<8x32xf32>
    %43 = vector.extract_strided_slice %11 {offsets = [8, 0], sizes = [8, 32], strides = [1, 1]} : vector<16x32xf32> to vector<8x32xf32>
    %44 = vector.shape_cast %41 : vector<8x32xf32> to vector<1x8x32xf32>
    %45 = vector.shape_cast %44 : vector<1x8x32xf32> to vector<1x8x32xf32>
    %46 = vector.broadcast %45 : vector<1x8x32xf32> to vector<4x8x32xf32>
    %47 = vector.shape_cast %42 : vector<8x32xf32> to vector<1x8x32xf32>
    %48 = vector.broadcast %47 : vector<1x8x32xf32> to vector<4x8x32xf32>
    %49 = arith.mulf %48, %12 : vector<4x8x32xf32>
    %50 = vector.shape_cast %43 : vector<8x32xf32> to vector<1x8x32xf32>
    %51 = vector.broadcast %50 : vector<1x8x32xf32> to vector<4x8x32xf32>
    %52 = arith.mulf %51, %12 : vector<4x8x32xf32>
    "tpu.trace_start"() <{level = 10 : i32, message = "hse,hte->hst"}> : () -> ()
    %cst_23 = arith.constant dense<0.000000e+00> : vector<4x8x8xf32>
    %53 = tpu.matmul %46, %49, %cst_23 {dimension_numbers = #tpu.dot_dimension_numbers<[2], [2], [1], [1], [0, 0, 0, 1, 1, 1], [0], [0]>} : vector<4x8x32xf32>, vector<4x8x32xf32>, vector<4x8x8xf32> -> vector<4x8x8xf32>
    "tpu.trace_stop"() : () -> ()
    %cst_24 = arith.constant 0.353553385 : f32
    %54 = vector.broadcast %cst_24 : f32 to vector<4x8x8xf32>
    %55 = arith.mulf %53, %54 : vector<4x8x8xf32>
    %cst_25 = arith.constant dense<0xFF800000> : vector<4x8xf32>
    %56 = vector.multi_reduction <maximumf>, %55, %cst_25 [2] : vector<4x8x8xf32> to vector<4x8xf32>
    %57 = vector.shape_cast %56 : vector<4x8xf32> to vector<4x8x1xf32>
    %58 = vector.broadcast %57 : vector<4x8x1xf32> to vector<4x8x8xf32>
    %59 = arith.subf %55, %58 : vector<4x8x8xf32>
    %60 = math.exp %59 : vector<4x8x8xf32>
    %cst_26 = arith.constant dense<0.000000e+00> : vector<4x8xf32>
    %61 = vector.multi_reduction <add>, %60, %cst_26 [2] : vector<4x8x8xf32> to vector<4x8xf32>
    %62 = vector.shape_cast %61 : vector<4x8xf32> to vector<4x8x1xf32>
    %63 = tpu.reciprocal %62 {approx = true} : vector<4x8x1xf32> -> vector<4x8x1xf32>
    %64 = vector.broadcast %63 : vector<4x8x1xf32> to vector<4x8x8xf32>
    %65 = arith.mulf %60, %64 : vector<4x8x8xf32>
    "tpu.trace_start"() <{level = 10 : i32, message = "hst,hte->hse"}> : () -> ()
    %cst_27 = arith.constant dense<0.000000e+00> : vector<4x8x32xf32>
    %66 = tpu.matmul %65, %52, %cst_27 {dimension_numbers = #tpu.dot_dimension_numbers<[2], [1], [1], [2], [0, 0, 0, 1, 1, 2], [0], [0]>} : vector<4x8x8xf32>, vector<4x8x32xf32>, vector<4x8x32xf32> -> vector<4x8x32xf32>
    "tpu.trace_stop"() : () -> ()
    %cst_28 = arith.constant dense<0.000000e+00> : vector<8x32xf32>
    %67 = vector.multi_reduction <add>, %66, %cst_28 [0] : vector<4x8x32xf32> to vector<8x32xf32>
    %c8 = arith.constant 8 : index
    %c0_29 = arith.constant 0 : index
    %68 = vector.load %arg7[%c8, %c0_29] : memref<16x32xf32, #tpu.memory_space<vmem>>, vector<8x32xf32>
    tpu.vector_store %arg7[%c8, %c0_29], %67 {strides = array<i32>} : memref<16x32xf32, #tpu.memory_space<vmem>>, vector<8x32xf32>,
    %c0_30 = arith.constant 0 : index
    %c0_31 = arith.constant 0 : index
    %69 = vector.load %arg5[%c0_30, %c0_31] : memref<8x64xf32, #tpu.memory_space<vmem>>, vector<1x32xf32>
    %c1_32 = arith.constant 1 : index
    %c0_33 = arith.constant 0 : index
    %70 = vector.load %arg5[%c1_32, %c0_33] : memref<8x64xf32, #tpu.memory_space<vmem>>, vector<1x32xf32>
    %c2_34 = arith.constant 2 : index
    %c0_35 = arith.constant 0 : index
    %71 = vector.load %arg5[%c2_34, %c0_35] : memref<8x64xf32, #tpu.memory_space<vmem>>, vector<1x32xf32>
    %c3_36 = arith.constant 3 : index
    %c0_37 = arith.constant 0 : index
    %72 = vector.load %arg5[%c3_36, %c0_37] : memref<8x64xf32, #tpu.memory_space<vmem>>, vector<1x64xf32>
    %c4 = arith.constant 4 : index
    %c0_38 = arith.constant 0 : index
    %73 = vector.load %arg5[%c4, %c0_38] : memref<8x64xf32, #tpu.memory_space<vmem>>, vector<1x32xf32>
    %c5 = arith.constant 5 : index
    %c0_39 = arith.constant 0 : index
    %74 = vector.load %arg5[%c5, %c0_39] : memref<8x64xf32, #tpu.memory_space<vmem>>, vector<1x32xf32>
    %c6 = arith.constant 6 : index
    %c0_40 = arith.constant 0 : index
    %75 = vector.load %arg5[%c6, %c0_40] : memref<8x64xf32, #tpu.memory_space<vmem>>, vector<1x32xf32>
    %c0_41 = arith.constant 0 : index
    %c0_42 = arith.constant 0 : index
    %76 = vector.load %arg7[%c0_41, %c0_42] : memref<16x32xf32, #tpu.memory_space<vmem>>, vector<16x32xf32>
    %cst_43 = arith.constant dense<0.000000e+00> : vector<16x32xf32>
    %77 = tpu.matmul %76, %8, %cst_43 {dimension_numbers = #tpu.dot_dimension_numbers<[1], [0], [0], [1], [0, 0, 1, 1], [], []>} : vector<16x32xf32>, vector<32x32xf32>, vector<16x32xf32> -> vector<16x32xf32>
    %78 = vector.broadcast %69 : vector<1x32xf32> to vector<16x32xf32>
    %79 = arith.addf %77, %78 : vector<16x32xf32>
    %80 = arith.addf %0, %79 : vector<16x32xf32>
    %cst_44 = arith.constant dense<0.000000e+00> : vector<16xf32>
    %81 = vector.multi_reduction <add>, %80, %cst_44 [1] : vector<16x32xf32> to vector<16xf32>
    %82 = vector.shape_cast %81 : vector<16xf32> to vector<16x1xf32>
    %cst_45 = arith.constant 3.200000e+01 : f32
    %83 = vector.broadcast %cst_45 : f32 to vector<16x1xf32>
    %84 = arith.divf %82, %83 : vector<16x1xf32>
    %85 = vector.broadcast %84 : vector<16x1xf32> to vector<16x32xf32>
    %86 = arith.subf %80, %85 : vector<16x32xf32>
    %87 = arith.mulf %86, %86 : vector<16x32xf32>
    %cst_46 = arith.constant dense<0.000000e+00> : vector<16xf32>
    %88 = vector.multi_reduction <add>, %87, %cst_46 [1] : vector<16x32xf32> to vector<16xf32>
    %89 = vector.shape_cast %88 : vector<16xf32> to vector<16x1xf32>
    %cst_47 = arith.constant 3.200000e+01 : f32
    %90 = vector.broadcast %cst_47 : f32 to vector<16x1xf32>
    %91 = arith.divf %89, %90 : vector<16x1xf32>
    %92 = vector.broadcast %84 : vector<16x1xf32> to vector<16x32xf32>
    %93 = arith.subf %80, %92 : vector<16x32xf32>
    %cst_48 = arith.constant 9.99999974E-6 : f32
    %94 = vector.broadcast %cst_48 : f32 to vector<16x1xf32>
    %95 = arith.addf %91, %94 : vector<16x1xf32>
    %96 = math.rsqrt %95 : vector<16x1xf32>
    %97 = vector.broadcast %96 : vector<16x1xf32> to vector<16x32xf32>
    %98 = arith.mulf %93, %97 : vector<16x32xf32>
    %99 = vector.broadcast %70 : vector<1x32xf32> to vector<16x32xf32>
    %100 = arith.mulf %98, %99 : vector<16x32xf32>
    %101 = vector.broadcast %71 : vector<1x32xf32> to vector<16x32xf32>
    %102 = arith.addf %100, %101 : vector<16x32xf32>
    %c0_49 = arith.constant 0 : index
    %c0_50 = arith.constant 0 : index
    %103 = vector.load %arg2[%c0_49, %c0_50] : memref<32x64xf32, #tpu.memory_space<vmem>>, vector<32x64xf32>
    %cst_51 = arith.constant dense<0.000000e+00> : vector<16x64xf32>
    %104 = tpu.matmul %102, %103, %cst_51 {dimension_numbers = #tpu.dot_dimension_numbers<[1], [0], [0], [1], [0, 0, 1, 1], [], []>} : vector<16x32xf32>, vector<32x64xf32>, vector<16x64xf32> -> vector<16x64xf32>
    %105 = vector.broadcast %72 : vector<1x64xf32> to vector<16x64xf32>
    %106 = arith.addf %104, %105 : vector<16x64xf32>
    %cst_52 = arith.constant 5.000000e-01 : f32
    %107 = vector.broadcast %cst_52 : f32 to vector<16x64xf32>
    %108 = arith.mulf %107, %106 : vector<16x64xf32>
    %cst_53 = arith.constant 0.707106769 : f32
    %109 = vector.broadcast %cst_53 : f32 to vector<16x64xf32>
    %110 = arith.mulf %106, %109 : vector<16x64xf32>
    %111 = math.erf %110 : vector<16x64xf32>
    %cst_54 = arith.constant 1.000000e+00 : f32
    %112 = vector.broadcast %cst_54 : f32 to vector<16x64xf32>
    %113 = arith.addf %112, %111 : vector<16x64xf32>
    %114 = arith.mulf %108, %113 : vector<16x64xf32>
    %c0_55 = arith.constant 0 : index
    %c0_56 = arith.constant 0 : index
    %115 = vector.load %arg3[%c0_55, %c0_56] : memref<64x32xf32, #tpu.memory_space<vmem>>, vector<64x32xf32>
    %cst_57 = arith.constant dense<0.000000e+00> : vector<16x32xf32>
    %116 = tpu.matmul %114, %115, %cst_57 {dimension_numbers = #tpu.dot_dimension_numbers<[1], [0], [0], [1], [0, 0, 1, 1], [], []>} : vector<16x64xf32>, vector<64x32xf32>, vector<16x32xf32> -> vector<16x32xf32>
    %117 = vector.broadcast %73 : vector<1x32xf32> to vector<16x32xf32>
    %118 = arith.addf %116, %117 : vector<16x32xf32>
    %119 = arith.addf %102, %118 : vector<16x32xf32>
    %cst_58 = arith.constant dense<0.000000e+00> : vector<16xf32>
    %120 = vector.multi_reduction <add>, %119, %cst_58 [1] : vector<16x32xf32> to vector<16xf32>
    %121 = vector.shape_cast %120 : vector<16xf32> to vector<16x1xf32>
    %cst_59 = arith.constant 3.200000e+01 : f32
    %122 = vector.broadcast %cst_59 : f32 to vector<16x1xf32>
    %123 = arith.divf %121, %122 : vector<16x1xf32>
    %124 = vector.broadcast %123 : vector<16x1xf32> to vector<16x32xf32>
    %125 = arith.subf %119, %124 : vector<16x32xf32>
    %126 = arith.mulf %125, %125 : vector<16x32xf32>
    %cst_60 = arith.constant dense<0.000000e+00> : vector<16xf32>
    %127 = vector.multi_reduction <add>, %126, %cst_60 [1] : vector<16x32xf32> to vector<16xf32>
    %128 = vector.shape_cast %127 : vector<16xf32> to vector<16x1xf32>
    %cst_61 = arith.constant 3.200000e+01 : f32
    %129 = vector.broadcast %cst_61 : f32 to vector<16x1xf32>
    %130 = arith.divf %128, %129 : vector<16x1xf32>
    %131 = vector.broadcast %123 : vector<16x1xf32> to vector<16x32xf32>
    %132 = arith.subf %119, %131 : vector<16x32xf32>
    %cst_62 = arith.constant 9.99999974E-6 : f32
    %133 = vector.broadcast %cst_62 : f32 to vector<16x1xf32>
    %134 = arith.addf %130, %133 : vector<16x1xf32>
    %135 = math.rsqrt %134 : vector<16x1xf32>
    %136 = vector.broadcast %135 : vector<16x1xf32> to vector<16x32xf32>
    %137 = arith.mulf %132, %136 : vector<16x32xf32>
    %138 = vector.broadcast %74 : vector<1x32xf32> to vector<16x32xf32>
    %139 = arith.mulf %137, %138 : vector<16x32xf32>
    %140 = vector.broadcast %75 : vector<1x32xf32> to vector<16x32xf32>
    %141 = arith.addf %139, %140 : vector<16x32xf32>
    %c0_63 = arith.constant 0 : index
    %c0_64 = arith.constant 0 : index
    %142 = vector.load %arg6[%c0_63, %c0_64] : memref<16x32xf32, #tpu.memory_space<vmem>>, vector<16x32xf32>
    tpu.vector_store %arg6[%c0_63, %c0_64], %141 {strides = array<i32>} : memref<16x32xf32, #tpu.memory_space<vmem>>, vector<16x32xf32>,
    return
  }
}

</mosaic_0001>

<llo_original>
// kernel: tpu_custom_call.1
$region0: #{tpu_custom_call.1}
  #allocation0 [shape = 'u32[]', space=smem, size = 0x4, offset = 0x4, fixed_abs, tag = 'smem constant byte address 0x4 - core index']
  #allocation1 [shape = 'u32[144,128]{1,0:T(1,128)}', space=vmem, size = 0x12000, scoped, tag = 'internal scratch']
  #allocation2 [shape = 'f32[16,32]{1,0:T(8,128)}', space=vmem, size = 0x2000, scoped, tag = 'scratch operand']
  %s0 = inlined_call_operand.vmem [shape: f32[16,32], index: 0, kind: input, shape index: {}]
  %s1 = inlined_call_operand.hbm [shape: f32[4,32,32], index: 1, kind: input, shape index: {}]
  %s2 = inlined_call_operand.vmem [shape: f32[32,64], index: 2, kind: input, shape index: {}]
  %s3 = inlined_call_operand.vmem [shape: f32[64,32], index: 3, kind: input, shape index: {}]
  %s4 = inlined_call_operand.vmem [shape: f32[4,8,32], index: 4, kind: input, shape index: {}]
  %s5 = inlined_call_operand.vmem [shape: f32[8,64], index: 5, kind: input, shape index: {}]
  %s6 = inlined_call_operand.hbm [shape: f32[16,32], index: 6, kind: output, shape index: {}]
  %s7 = sld [smem:[#allocation0]]
  $region38: #{tpu_custom_call.1} parent=0
    _
  %s9 = ssub.s32 1, %s7
  %s10 = scalar_select 0, %s9, %s7
  $region1: #{tpu_custom_call.1} parent=0
    #allocation3 [shape = 'u8[65536]{0}', space=vmem, size = 0x10000, scoped, tag = 'input window, operand 1, single buffered']
    #allocation4 [shape = 's32[1]{0}', space=sflag, size = 0x4, scoped, tag = 'scoped memory for tpu_custom_call.1']
    #allocation5 [shape = 's32[1]{0}', space=sflag, size = 0x4, scoped, tag = 'scoped memory for tpu_custom_call.1']
    #allocation6 [shape = 'u8[8192]{0}', space=vmem, size = 0x2000, scoped, tag = 'output window, operand 0, single buffered']
    %11 = vsyncpa [#allocation4], 0
    %12 = vsyncpa [#allocation5], 0
    // Predicated region
    $region2: #{tpu_custom_call.1} parent=1 // pred_check
      _
    $region3: #{tpu_custom_call.1} parent=1 // pred_check_branch
      %14 = sbr.rel (0) target = $region5
    $region4: #{tpu_custom_call.1} parent=1 // pred_region
      _
    $region5: #{tpu_custom_call.1} parent=1 // pred_fallthru
      _
    // Predicated region
    $region6: #{tpu_custom_call.1} parent=1 // pred_check
      _
    $region7: #{tpu_custom_call.1} parent=1 // pred_check_branch
      %16 = sbr.rel (0) target = $region9
    $region8: #{tpu_custom_call.1} parent=1 // pred_region
      %s18 = ssub.s32 2048, 2048
      %19 = vsyncadd [#allocation4], %s18
      %s20 = sshll.u32 [#allocation3], 4
      %s21 = int_to_ptr.vmem [resolvable:$true] %s20
      %26 = dma.hbm_to_vmem [thread:$0]  %s1, 2048, %s21, [#allocation4], 128, 128, 8
    $region9: #{tpu_custom_call.1} parent=1 // pred_fallthru
      _
    // Predicated region
    $region10: #{tpu_custom_call.1} parent=1 // pred_check
      _
    $region11: #{tpu_custom_call.1} parent=1 // pred_check_branch
      %28 = sbr.rel (0) target = $region13
    $region12: #{tpu_custom_call.1} parent=1 // pred_region
      _
    $region13: #{tpu_custom_call.1} parent=1 // pred_fallthru
      _
    // Predicated region
    $region14: #{tpu_custom_call.1} parent=1 // pred_check
      _
    $region15: #{tpu_custom_call.1} parent=1 // pred_check_branch
      %30 = sbr.rel (0) target = $region17
    $region16: #{tpu_custom_call.1} parent=1 // pred_region
      _
    $region17: #{tpu_custom_call.1} parent=1 // pred_fallthru
      _
    // Predicated region
    $region18: #{tpu_custom_call.1} parent=1 // pred_check
      _
    $region19: #{tpu_custom_call.1} parent=1 // pred_check_branch
      %32 = sbr.rel (0) target = $region21
    $region20: #{tpu_custom_call.1} parent=1 // pred_region
      _
    $region21: #{tpu_custom_call.1} parent=1 // pred_fallthru
      _
    // Predicated region
    $region22: #{tpu_custom_call.1} parent=1 // pred_check
      _
    $region23: #{tpu_custom_call.1} parent=1 // pred_check_branch
      %34 = sbr.rel (0) target = $region25
    $region24: #{tpu_custom_call.1} parent=1 // pred_region
      _
    $region25: #{tpu_custom_call.1} parent=1 // pred_fallthru
      _
    // Predicated region
    $region26: #{tpu_custom_call.1} parent=1 // pred_check
      _
    $region27: #{tpu_custom_call.1} parent=1 // pred_check_branch
      %36 = sbr.rel (0) target = $region29
    $region28: #{tpu_custom_call.1} parent=1 // pred_region
      %37 = dma.done [#allocation4], 2048
    $region29: #{tpu_custom_call.1} parent=1 // pred_fallthru
      _
    %v38 = vld [vmem:[%s0] sm:$0xff]
    %v39 = vld [vmem:[%s0 + $0x8] sm:$0xff]
    %v40 = vld [vmem:[#allocation3] sm:$0xff]
    %v41 = vld [vmem:[#allocation3 + $0x8] sm:$0xff]
    %v42 = vld [vmem:[#allocation3 + $0x10] sm:$0xff]
    %v43 = vld [vmem:[#allocation3 + $0x18] sm:$0xff]
    %s44 = scalar_lea.vmem [#allocation3], 32
    %v45 = vld [vmem:[%s44] sm:$0xff]
    %v46 = vld [vmem:[%s44 + $0x8] sm:$0xff]
    %v47 = vld [vmem:[%s44 + $0x10] sm:$0xff]
    %v48 = vld [vmem:[%s44 + $0x18] sm:$0xff]
    %s49 = scalar_lea.vmem [#allocation3], 64
    %v50 = vld [vmem:[%s49] sm:$0xff]
    %v51 = vld [vmem:[%s49 + $0x8] sm:$0xff]
    %v52 = vld [vmem:[%s49 + $0x10] sm:$0xff]
    %v53 = vld [vmem:[%s49 + $0x18] sm:$0xff]
    %s54 = scalar_lea.vmem [#allocation3], 96
    %v55 = vld [vmem:[%s54] sm:$0xff]
    %v56 = vld [vmem:[%s54 + $0x8] sm:$0xff]
    %v57 = vld [vmem:[%s54 + $0x10] sm:$0xff]
    %v58 = vld [vmem:[%s54 + $0x18] sm:$0xff]
    %vm59 = vcmask 261120
    %v61 = vsel %vm59, %v38, 0
    %v64 = vsel %vm59, %v39, 0
    %66 = vmatprep.subr.mxu0 0.0
    %67 = vmatpush1.msra.mxu0 %v40
    %68 = vmatprep.subr.mxu0 0.0
    %69 = vmatpush1.msra.mxu0 %v41
    %70 = vmatprep.subr.mxu0 0.0
    %71 = vmatpush1.msra.mxu0 %v42
    %72 = vmatprep.subr.mxu0 0.0
    %73 = vmatpush1.msra.mxu0 %v43
    %74 = vmatprep.subr.mxu0 0.0
    %75 = vmatpush1.msra.mxu0 0.0
    %76 = vmatprep.subr.mxu0 0.0
    %77 = vmatpush1.msra.mxu0 0.0
    %78 = vmatprep.subr.mxu0 0.0
    %79 = vmatpush1.msra.mxu0 0.0
    %80 = vmatprep.subr.mxu0 0.0
    %81 = vmatpush1.msra.mxu0 0.0
    %82 = vmatprep.subr.mxu0 0.0
    %83 = vmatpush1.msra.mxu0 0.0
    %84 = vmatprep.subr.mxu0 0.0
    %85 = vmatpush1.msra.mxu0 0.0
    %86 = vmatprep.subr.mxu0 0.0
    %87 = vmatpush1.msra.mxu0 0.0
    %88 = vmatprep.subr.mxu0 0.0
    %89 = vmatpush1.msra.mxu0 0.0
    %90 = vmatprep.subr.mxu0 0.0
    %91 = vmatpush1.msra.mxu0 0.0
    %92 = vmatprep.subr.mxu0 0.0
    %93 = vmatpush1.msra.mxu0 0.0
    %94 = vmatprep.subr.mxu0 0.0
    %95 = vmatpush1.msra.mxu0 0.0
    %96 = vmatprep.subr.mxu0 0.0
    %97 = vmatpush1.msra.mxu0 0.0
    %98 = vmatprep.subr.mxu0 0.0
    %99 = vmatpush1.msra.mxu0 0.0
    %100 = vmatprep.subr.mxu0 0.0
    %101 = vmatpush1.msra.mxu0 0.0
    %102 = vmatprep.subr.mxu0 0.0
    %103 = vmatpush1.msra.mxu0 0.0
    %104 = vmatprep.subr.mxu0 0.0
    %105 = vmatpush1.msra.mxu0 0.0
    %106 = vmatprep.subr.mxu0 0.0
    %107 = vmatpush1.msra.mxu0 0.0
    %108 = vmatprep.subr.mxu0 0.0
    %109 = vmatpush1.msra.mxu0 0.0
    %110 = vmatprep.subr.mxu0 0.0
    %111 = vmatpush1.msra.mxu0 0.0
    %112 = vmatprep.subr.mxu0 0.0
    %113 = vmatpush1.msra.mxu0 0.0
    %114 = vmatprep.subr.mxu0 0.0
    %115 = vmatpush1.msra.mxu0 0.0
    %116 = vmatprep.subr.mxu0 0.0
    %117 = vmatpush1.msra.mxu0 0.0
    %118 = vmatprep.subr.mxu0 0.0
    %119 = vmatpush1.msra.mxu0 0.0
    %120 = vmatprep.subr.mxu0 0.0
    %121 = vmatpush1.msra.mxu0 0.0
    %122 = vmatprep.subr.mxu0 0.0
    %123 = vmatpush1.msra.mxu0 0.0
    %124 = vmatprep.subr.mxu0 0.0
    %125 = vmatpush1.msra.mxu0 0.0
    %126 = vmatprep.subr.mxu0 0.0
    %127 = vmatpush1.msra.mxu0 0.0
    %128 = vmatprep.subr.mxu0 0.0
    %129 = vmatpush1.msra.mxu0 0.0
    %130 = vmatprep.mubr.f32.mxu0 0.0
    %131 = vmatmul.mubr.f32.gmra.mrb[0].mxu0 %v61
    %v132 = vpop.f32.mrb[0].mxu0
    %v133 = vadd.f32 0.0, %v132
    %v134 = vpop.f32.mrb[0].mxu0
    %135 = vmatprep.mubr.f32.mxu0 0.0
    %136 = vmatmul.mubr.f32.gmra.mrb[0].mxu0 %v64
    %v137 = vpop.f32.mrb[0].mxu0
    %v138 = vadd.f32 0.0, %v137
    %v139 = vpop.f32.mrb[0].mxu0
    %140 = vdwg.mxu0
    %141 = vmatprep.subr.mxu0 0.0
    %142 = vmatpush1.msra.mxu0 %v45
    %143 = vmatprep.subr.mxu0 0.0
    %144 = vmatpush1.msra.mxu0 %v46
    %145 = vmatprep.subr.mxu0 0.0
    %146 = vmatpush1.msra.mxu0 %v47
    %147 = vmatprep.subr.mxu0 0.0
    %148 = vmatpush1.msra.mxu0 %v48
    %149 = vmatprep.subr.mxu0 0.0
    %150 = vmatpush1.msra.mxu0 0.0
    %151 = vmatprep.subr.mxu0 0.0
    %152 = vmatpush1.msra.mxu0 0.0
    %153 = vmatprep.subr.mxu0 0.0
    %154 = vmatpush1.msra.mxu0 0.0
    %155 = vmatprep.subr.mxu0 0.0
    %156 = vmatpush1.msra.mxu0 0.0
    %157 = vmatprep.subr.mxu0 0.0
    %158 = vmatpush1.msra.mxu0 0.0
    %159 = vmatprep.subr.mxu0 0.0
    %160 = vmatpush1.msra.mxu0 0.0
    %161 = vmatprep.subr.mxu0 0.0
    %162 = vmatpush1.msra.mxu0 0.0
    %163 = vmatprep.subr.mxu0 0.0
    %164 = vmatpush1.msra.mxu0 0.0
    %165 = vmatprep.subr.mxu0 0.0
    %166 = vmatpush1.msra.mxu0 0.0
    %167 = vmatprep.subr.mxu0 0.0
    %168 = vmatpush1.msra.mxu0 0.0
    %169 = vmatprep.subr.mxu0 0.0
    %170 = vmatpush1.msra.mxu0 0.0
    %171 = vmatprep.subr.mxu0 0.0
    %172 = vmatpush1.msra.mxu0 0.0
    %173 = vmatprep.subr.mxu0 0.0
    %174 = vmatpush1.msra.mxu0 0.0
    %175 = vmatprep.subr.mxu0 0.0
    %176 = vmatpush1.msra.mxu0 0.0
    %177 = vmatprep.subr.mxu0 0.0
    %178 = vmatpush1.msra.mxu0 0.0
    %179 = vmatprep.subr.mxu0 0.0
    %180 = vmatpush1.msra.mxu0 0.0
    %181 = vmatprep.subr.mxu0 0.0
    %182 = vmatpush1.msra.mxu0 0.0
    %183 = vmatprep.subr.mxu0 0.0
    %184 = vmatpush1.msra.mxu0 0.0
    %185 = vmatprep.subr.mxu0 0.0
    %186 = vmatpush1.msra.mxu0 0.0
    %187 = vmatprep.subr.mxu0 0.0
    %188 = vmatpush1.msra.mxu0 0.0
    %189 = vmatprep.subr.mxu0 0.0
    %190 = vmatpush1.msra.mxu0 0.0
    %191 = vmatprep.subr.mxu0 0.0
    %192 = vmatpush1.msra.mxu0 0.0
    %193 = vmatprep.subr.mxu0 0.0
    %194 = vmatpush1.msra.mxu0 0.0
    %195 = vmatprep.subr.mxu0 0.0
    %196 = vmatpush1.msra.mxu0 0.0
    %197 = vmatprep.subr.mxu0 0.0
    %198 = vmatpush1.msra.mxu0 0.0
    %199 = vmatprep.subr.mxu0 0.0
    %200 = vmatpush1.msra.mxu0 0.0
    %201 = vmatprep.subr.mxu0 0.0
    %202 = vmatpush1.msra.mxu0 0.0
    %203 = vmatprep.subr.mxu0 0.0
    %204 = vmatpush1.msra.mxu0 0.0
    %205 = vmatprep.mubr.f32.mxu0 0.0
    %206 = vmatmul.mubr.f32.gmra.mrb[0].mxu0 %v61
    %v207 = vpop.f32.mrb[0].mxu0
    %v208 = vadd.f32 0.0, %v207
    %v209 = vpop.f32.mrb[0].mxu0
    %210 = vmatprep.mubr.f32.mxu0 0.0
    %211 = vmatmul.mubr.f32.gmra.mrb[0].mxu0 %v64
    %v212 = vpop.f32.mrb[0].mxu0
    %v213 = vadd.f32 0.0, %v212
    %v214 = vpop.f32.mrb[0].mxu0
    %215 = vdwg.mxu0
    %216 = vmatprep.subr.mxu0 0.0
    %217 = vmatpush1.msra.mxu0 %v50
    %218 = vmatprep.subr.mxu0 0.0
    %219 = vmatpush1.msra.mxu0 %v51
    %220 = vmatprep.subr.mxu0 0.0
    %221 = vmatpush1.msra.mxu0 %v52
    %222 = vmatprep.subr.mxu0 0.0
    %223 = vmatpush1.msra.mxu0 %v53
    %224 = vmatprep.subr.mxu0 0.0
    %225 = vmatpush1.msra.mxu0 0.0
    %226 = vmatprep.subr.mxu0 0.0
    %227 = vmatpush1.msra.mxu0 0.0
    %228 = vmatprep.subr.mxu0 0.0
    %229 = vmatpush1.msra.mxu0 0.0
    %230 = vmatprep.subr.mxu0 0.0
    %231 = vmatpush1.msra.mxu0 0.0
    %232 = vmatprep.subr.mxu0 0.0
    %233 = vmatpush1.msra.mxu0 0.0
    %234 = vmatprep.subr.mxu0 0.0
    %235 = vmatpush1.msra.mxu0 0.0
    %236 = vmatprep.subr.mxu0 0.0
    %237 = vmatpush1.msra.mxu0 0.0
    %238 = vmatprep.subr.mxu0 0.0
    %239 = vmatpush1.msra.mxu0 0.0
    %240 = vmatprep.subr.mxu0 0.0
    %241 = vmatpush1.msra.mxu0 0.0
    %242 = vmatprep.subr.mxu0 0.0
    %243 = vmatpush1.msra.mxu0 0.0
    %244 = vmatprep.subr.mxu0 0.0
    %245 = vmatpush1.msra.mxu0 0.0
    %246 = vmatprep.subr.mxu0 0.0
    %247 = vmatpush1.msra.mxu0 0.0
    %248 = vmatprep.subr.mxu0 0.0
    %249 = vmatpush1.msra.mxu0 0.0
    %250 = vmatprep.subr.mxu0 0.0
    %251 = vmatpush1.msra.mxu0 0.0
    %252 = vmatprep.subr.mxu0 0.0
    %253 = vmatpush1.msra.mxu0 0.0
    %254 = vmatprep.subr.mxu0 0.0
    %255 = vmatpush1.msra.mxu0 0.0
    %256 = vmatprep.subr.mxu0 0.0
    %257 = vmatpush1.msra.mxu0 0.0
    %258 = vmatprep.subr.mxu0 0.0
    %259 = vmatpush1.msra.mxu0 0.0
    %260 = vmatprep.subr.mxu0 0.0
    %261 = vmatpush1.msra.mxu0 0.0
    %262 = vmatprep.subr.mxu0 0.0
    %263 = vmatpush1.msra.mxu0 0.0
    %264 = vmatprep.subr.mxu0 0.0
    %265 = vmatpush1.msra.mxu0 0.0
    %266 = vmatprep.subr.mxu0 0.0
    %267 = vmatpush1.msra.mxu0 0.0
    %268 = vmatprep.subr.mxu0 0.0
    %269 = vmatpush1.msra.mxu0 0.0
    %270 = vmatprep.subr.mxu0 0.0
    %271 = vmatpush1.msra.mxu0 0.0
    %272 = vmatprep.subr.mxu0 0.0
    %273 = vmatpush1.msra.mxu0 0.0
    %274 = vmatprep.subr.mxu0 0.0
    %275 = vmatpush1.msra.mxu0 0.0
    %276 = vmatprep.subr.mxu0 0.0
    %277 = vmatpush1.msra.mxu0 0.0
    %278 = vmatprep.subr.mxu0 0.0
    %279 = vmatpush1.msra.mxu0 0.0
    %280 = vmatprep.mubr.f32.mxu0 0.0
    %281 = vmatmul.mubr.f32.gmra.mrb[0].mxu0 %v61
    %v282 = vpop.f32.mrb[0].mxu0
    %v283 = vadd.f32 0.0, %v282
    %v284 = vpop.f32.mrb[0].mxu0
    %285 = vmatprep.mubr.f32.mxu0 0.0
    %286 = vmatmul.mubr.f32.gmra.mrb[0].mxu0 %v64
    %v287 = vpop.f32.mrb[0].mxu0
    %v288 = vadd.f32 0.0, %v287
    %v289 = vpop.f32.mrb[0].mxu0
    %290 = vdwg.mxu0
    %v291 = vld [vmem:[%s4] sm:$0xff]
    %v292 = vld [vmem:[%s4 + $0x8] sm:$0xff]
    %v293 = vld [vmem:[%s4 + $0x10] sm:$0xff]
    %v294 = vld [vmem:[%s4 + $0x18] sm:$0xff]
    %v295 = vmul.f32 %v208, %v291
    %v296 = vmul.f32 %v208, %v292
    %v297 = vmul.f32 %v208, %v293
    %v298 = vmul.f32 %v208, %v294
    %v299 = vmul.f32 %v283, %v291
    %v300 = vmul.f32 %v283, %v292
    %v301 = vmul.f32 %v283, %v293
    %v302 = vmul.f32 %v283, %v294
    %v304 = vsel %vm59, %v133, 0
    %v307 = vsel %vm59, %v295, 0
    %309 = vmatprep.subr.mxu0 0.0
    %310 = vmatpush1.xpose.msra.mxu0 %v307
    %311 = vmatprep.subr.mxu0 0.0
    %312 = vmatpush1.xpose.msra.mxu0 0.0
    %313 = vmatprep.subr.mxu0 0.0
    %314 = vmatpush1.xpose.msra.mxu0 0.0
    %315 = vmatprep.subr.mxu0 0.0
    %316 = vmatpush1.xpose.msra.mxu0 0.0
    %317 = vmatprep.subr.mxu0 0.0
    %318 = vmatpush1.xpose.msra.mxu0 0.0
    %319 = vmatprep.subr.mxu0 0.0
    %320 = vmatpush1.xpose.msra.mxu0 0.0
    %321 = vmatprep.subr.mxu0 0.0
    %322 = vmatpush1.xpose.msra.mxu0 0.0
    %323 = vmatprep.subr.mxu0 0.0
    %324 = vmatpush1.xpose.msra.mxu0 0.0
    %325 = vmatprep.subr.mxu0 0.0
    %326 = vmatpush1.xpose.msra.mxu0 0.0
    %327 = vmatprep.subr.mxu0 0.0
    %328 = vmatpush1.xpose.msra.mxu0 0.0
    %329 = vmatprep.subr.mxu0 0.0
    %330 = vmatpush1.xpose.msra.mxu0 0.0
    %331 = vmatprep.subr.mxu0 0.0
    %332 = vmatpush1.xpose.msra.mxu0 0.0
    %333 = vmatprep.subr.mxu0 0.0
    %334 = vmatpush1.xpose.msra.mxu0 0.0
    %335 = vmatprep.subr.mxu0 0.0
    %336 = vmatpush1.xpose.msra.mxu0 0.0
    %337 = vmatprep.subr.mxu0 0.0
    %338 = vmatpush1.xpose.msra.mxu0 0.0
    %339 = vmatprep.subr.mxu0 0.0
    %340 = vmatpush1.xpose.msra.mxu0 0.0
    %341 = vmatprep.subr.mxu0 0.0
    %342 = vmatpush1.xpose.msra.mxu0 0.0
    %343 = vmatprep.subr.mxu0 0.0
    %344 = vmatpush1.xpose.msra.mxu0 0.0
    %345 = vmatprep.subr.mxu0 0.0
    %346 = vmatpush1.xpose.msra.mxu0 0.0
    %347 = vmatprep.subr.mxu0 0.0
    %348 = vmatpush1.xpose.msra.mxu0 0.0
    %349 = vmatprep.subr.mxu0 0.0
    %350 = vmatpush1.xpose.msra.mxu0 0.0
    %351 = vmatprep.subr.mxu0 0.0
    %352 = vmatpush1.xpose.msra.mxu0 0.0
    %353 = vmatprep.subr.mxu0 0.0
    %354 = vmatpush1.xpose.msra.mxu0 0.0
    %355 = vmatprep.subr.mxu0 0.0
    %356 = vmatpush1.xpose.msra.mxu0 0.0
    %357 = vmatprep.subr.mxu0 0.0
    %358 = vmatpush1.xpose.msra.mxu0 0.0
    %359 = vmatprep.subr.mxu0 0.0
    %360 = vmatpush1.xpose.msra.mxu0 0.0
    %361 = vmatprep.subr.mxu0 0.0
    %362 = vmatpush1.xpose.msra.mxu0 0.0
    %363 = vmatprep.subr.mxu0 0.0
    %364 = vmatpush1.xpose.msra.mxu0 0.0
    %365 = vmatprep.subr.mxu0 0.0
    %366 = vmatpush1.xpose.msra.mxu0 0.0
    %367 = vmatprep.subr.mxu0 0.0
    %368 = vmatpush1.xpose.msra.mxu0 0.0
    %369 = vmatprep.subr.mxu0 0.0
    %370 = vmatpush1.xpose.msra.mxu0 0.0
    %371 = vmatprep.subr.mxu0 0.0
    %372 = vmatpush1.xpose.msra.mxu0 0.0
    %373 = vmatprep.mubr.f32.mxu0 0.0
    %374 = vmatmul.mubr.f32.gmra.mrb[0].mxu0 %v304
    %v375 = vpop.f32.mrb[0].mxu0
    %v376 = vadd.f32 0.0, %v375
    %v377 = vpop.f32.mrb[0].mxu0
    %378 = vdwg.mxu0
    %v380 = vsel %vm59, %v296, 0
    %382 = vmatprep.subr.mxu0 0.0
    %383 = vmatpush1.xpose.msra.mxu0 %v380
    %384 = vmatprep.subr.mxu0 0.0
    %385 = vmatpush1.xpose.msra.mxu0 0.0
    %386 = vmatprep.subr.mxu0 0.0
    %387 = vmatpush1.xpose.msra.mxu0 0.0
    %388 = vmatprep.subr.mxu0 0.0
    %389 = vmatpush1.xpose.msra.mxu0 0.0
    %390 = vmatprep.subr.mxu0 0.0
    %391 = vmatpush1.xpose.msra.mxu0 0.0
    %392 = vmatprep.subr.mxu0 0.0
    %393 = vmatpush1.xpose.msra.mxu0 0.0
    %394 = vmatprep.subr.mxu0 0.0
    %395 = vmatpush1.xpose.msra.mxu0 0.0
    %396 = vmatprep.subr.mxu0 0.0
    %397 = vmatpush1.xpose.msra.mxu0 0.0
    %398 = vmatprep.subr.mxu0 0.0
    %399 = vmatpush1.xpose.msra.mxu0 0.0
    %400 = vmatprep.subr.mxu0 0.0
    %401 = vmatpush1.xpose.msra.mxu0 0.0
    %402 = vmatprep.subr.mxu0 0.0
    %403 = vmatpush1.xpose.msra.mxu0 0.0
    %404 = vmatprep.subr.mxu0 0.0
    %405 = vmatpush1.xpose.msra.mxu0 0.0
    %406 = vmatprep.subr.mxu0 0.0
    %407 = vmatpush1.xpose.msra.mxu0 0.0
    %408 = vmatprep.subr.mxu0 0.0
    %409 = vmatpush1.xpose.msra.mxu0 0.0
    %410 = vmatprep.subr.mxu0 0.0
    %411 = vmatpush1.xpose.msra.mxu0 0.0
    %412 = vmatprep.subr.mxu0 0.0
    %413 = vmatpush1.xpose.msra.mxu0 0.0
    %414 = vmatprep.subr.mxu0 0.0
    %415 = vmatpush1.xpose.msra.mxu0 0.0
    %416 = vmatprep.subr.mxu0 0.0
    %417 = vmatpush1.xpose.msra.mxu0 0.0
    %418 = vmatprep.subr.mxu0 0.0
    %419 = vmatpush1.xpose.msra.mxu0 0.0
    %420 = vmatprep.subr.mxu0 0.0
    %421 = vmatpush1.xpose.msra.mxu0 0.0
    %422 = vmatprep.subr.mxu0 0.0
    %423 = vmatpush1.xpose.msra.mxu0 0.0
    %424 = vmatprep.subr.mxu0 0.0
    %425 = vmatpush1.xpose.msra.mxu0 0.0
    %426 = vmatprep.subr.mxu0 0.0
    %427 = vmatpush1.xpose.msra.mxu0 0.0
    %428 = vmatprep.subr.mxu0 0.0
    %429 = vmatpush1.xpose.msra.mxu0 0.0
    %430 = vmatprep.subr.mxu0 0.0
    %431 = vmatpush1.xpose.msra.mxu0 0.0
    %432 = vmatprep.subr.mxu0 0.0
    %433 = vmatpush1.xpose.msra.mxu0 0.0
    %434 = vmatprep.subr.mxu0 0.0
    %435 = vmatpush1.xpose.msra.mxu0 0.0
    %436 = vmatprep.subr.mxu0 0.0
    %437 = vmatpush1.xpose.msra.mxu0 0.0
    %438 = vmatprep.subr.mxu0 0.0
    %439 = vmatpush1.xpose.msra.mxu0 0.0
    %440 = vmatprep.subr.mxu0 0.0
    %441 = vmatpush1.xpose.msra.mxu0 0.0
    %442 = vmatprep.subr.mxu0 0.0
    %443 = vmatpush1.xpose.msra.mxu0 0.0
    %444 = vmatprep.subr.mxu0 0.0
    %445 = vmatpush1.xpose.msra.mxu0 0.0
    %446 = vmatprep.mubr.f32.mxu0 0.0
    %447 = vmatmul.mubr.f32.gmra.mrb[0].mxu0 %v304
    %v448 = vpop.f32.mrb[0].mxu0
    %v449 = vadd.f32 0.0, %v448
    %v450 = vpop.f32.mrb[0].mxu0
    %451 = vdwg.mxu0
    %v453 = vsel %vm59, %v297, 0
    %455 = vmatprep.subr.mxu0 0.0
    %456 = vmatpush1.xpose.msra.mxu0 %v453
    %457 = vmatprep.subr.mxu0 0.0
    %458 = vmatpush1.xpose.msra.mxu0 0.0
    %459 = vmatprep.subr.mxu0 0.0
    %460 = vmatpush1.xpose.msra.mxu0 0.0
    %461 = vmatprep.subr.mxu0 0.0
    %462 = vmatpush1.xpose.msra.mxu0 0.0
    %463 = vmatprep.subr.mxu0 0.0
    %464 = vmatpush1.xpose.msra.mxu0 0.0
    %465 = vmatprep.subr.mxu0 0.0
    %466 = vmatpush1.xpose.msra.mxu0 0.0
    %467 = vmatprep.subr.mxu0 0.0
    %468 = vmatpush1.xpose.msra.mxu0 0.0
    %469 = vmatprep.subr.mxu0 0.0
    %470 = vmatpush1.xpose.msra.mxu0 0.0
    %471 = vmatprep.subr.mxu0 0.0
    %472 = vmatpush1.xpose.msra.mxu0 0.0
    %473 = vmatprep.subr.mxu0 0.0
    %474 = vmatpush1.xpose.msra.mxu0 0.0
    %475 = vmatprep.subr.mxu0 0.0
    %476 = vmatpush1.xpose.msra.mxu0 0.0
    %477 = vmatprep.subr.mxu0 0.0
    %478 = vmatpush1.xpose.msra.mxu0 0.0
    %479 = vmatprep.subr.mxu0 0.0
    %480 = vmatpush1.xpose.msra.mxu0 0.0
    %481 = vmatprep.subr.mxu0 0.0
    %482 = vmatpush1.xpose.msra.mxu0 0.0
    %483 = vmatprep.subr.mxu0 0.0
    %484 = vmatpush1.xpose.msra.mxu0 0.0
    %485 = vmatprep.subr.mxu0 0.0
    %486 = vmatpush1.xpose.msra.mxu0 0.0
    %487 = vmatprep.subr.mxu0 0.0
    %488 = vmatpush1.xpose.msra.mxu0 0.0
    %489 = vmatprep.subr.mxu0 0.0
    %490 = vmatpush1.xpose.msra.mxu0 0.0
    %491 = vmatprep.subr.mxu0 0.0
    %492 = vmatpush1.xpose.msra.mxu0 0.0
    %493 = vmatprep.subr.mxu0 0.0
    %494 = vmatpush1.xpose.msra.mxu0 0.0
    %495 = vmatprep.subr.mxu0 0.0
    %496 = vmatpush1.xpose.msra.mxu0 0.0
    %497 = vmatprep.subr.mxu0 0.0
    %498 = vmatpush1.xpose.msra.mxu0 0.0
    %499 = vmatprep.subr.mxu0 0.0
    %500 = vmatpush1.xpose.msra.mxu0 0.0
    %501 = vmatprep.subr.mxu0 0.0
    %502 = vmatpush1.xpose.msra.mxu0 0.0
    %503 = vmatprep.subr.mxu0 0.0
    %504 = vmatpush1.xpose.msra.mxu0 0.0
    %505 = vmatprep.subr.mxu0 0.0
    %506 = vmatpush1.xpose.msra.mxu0 0.0
    %507 = vmatprep.subr.mxu0 0.0
    %508 = vmatpush1.xpose.msra.mxu0 0.0
    %509 = vmatprep.subr.mxu0 0.0
    %510 = vmatpush1.xpose.msra.mxu0 0.0
    %511 = vmatprep.subr.mxu0 0.0
    %512 = vmatpush1.xpose.msra.mxu0 0.0
    %513 = vmatprep.subr.mxu0 0.0
    %514 = vmatpush1.xpose.msra.mxu0 0.0
    %515 = vmatprep.subr.mxu0 0.0
    %516 = vmatpush1.xpose.msra.mxu0 0.0
    %517 = vmatprep.subr.mxu0 0.0
    %518 = vmatpush1.xpose.msra.mxu0 0.0
    %519 = vmatprep.mubr.f32.mxu0 0.0
    %520 = vmatmul.mubr.f32.gmra.mrb[0].mxu0 %v304
    %v521 = vpop.f32.mrb[0].mxu0
    %v522 = vadd.f32 0.0, %v521
    %v523 = vpop.f32.mrb[0].mxu0
    %524 = vdwg.mxu0
    %v526 = vsel %vm59, %v298, 0
    %528 = vmatprep.subr.mxu0 0.0
    %529 = vmatpush1.xpose.msra.mxu0 %v526
    %530 = vmatprep.subr.mxu0 0.0
    %531 = vmatpush1.xpose.msra.mxu0 0.0
    %532 = vmatprep.subr.mxu0 0.0
    %533 = vmatpush1.xpose.msra.mxu0 0.0
    %534 = vmatprep.subr.mxu0 0.0
    %535 = vmatpush1.xpose.msra.mxu0 0.0
    %536 = vmatprep.subr.mxu0 0.0
    %537 = vmatpush1.xpose.msra.mxu0 0.0
    %538 = vmatprep.subr.mxu0 0.0
    %539 = vmatpush1.xpose.msra.mxu0 0.0
    %540 = vmatprep.subr.mxu0 0.0
    %541 = vmatpush1.xpose.msra.mxu0 0.0
    %542 = vmatprep.subr.mxu0 0.0
    %543 = vmatpush1.xpose.msra.mxu0 0.0
    %544 = vmatprep.subr.mxu0 0.0
    %545 = vmatpush1.xpose.msra.mxu0 0.0
    %546 = vmatprep.subr.mxu0 0.0
    %547 = vmatpush1.xpose.msra.mxu0 0.0
    %548 = vmatprep.subr.mxu0 0.0
    %549 = vmatpush1.xpose.msra.mxu0 0.0
    %550 = vmatprep.subr.mxu0 0.0
    %551 = vmatpush1.xpose.msra.mxu0 0.0
    %552 = vmatprep.subr.mxu0 0.0
    %553 = vmatpush1.xpose.msra.mxu0 0.0
    %554 = vmatprep.subr.mxu0 0.0
    %555 = vmatpush1.xpose.msra.mxu0 0.0
    %556 = vmatprep.subr.mxu0 0.0
    %557 = vmatpush1.xpose.msra.mxu0 0.0
    %558 = vmatprep.subr.mxu0 0.0
    %559 = vmatpush1.xpose.msra.mxu0 0.0
    %560 = vmatprep.subr.mxu0 0.0
    %561 = vmatpush1.xpose.msra.mxu0 0.0
    %562 = vmatprep.subr.mxu0 0.0
    %563 = vmatpush1.xpose.msra.mxu0 0.0
    %564 = vmatprep.subr.mxu0 0.0
    %565 = vmatpush1.xpose.msra.mxu0 0.0
    %566 = vmatprep.subr.mxu0 0.0
    %567 = vmatpush1.xpose.msra.mxu0 0.0
    %568 = vmatprep.subr.mxu0 0.0
    %569 = vmatpush1.xpose.msra.mxu0 0.0
    %570 = vmatprep.subr.mxu0 0.0
    %571 = vmatpush1.xpose.msra.mxu0 0.0
    %572 = vmatprep.subr.mxu0 0.0
    %573 = vmatpush1.xpose.msra.mxu0 0.0
    %574 = vmatprep.subr.mxu0 0.0
    %575 = vmatpush1.xpose.msra.mxu0 0.0
    %576 = vmatprep.subr.mxu0 0.0
    %577 = vmatpush1.xpose.msra.mxu0 0.0
    %578 = vmatprep.subr.mxu0 0.0
    %579 = vmatpush1.xpose.msra.mxu0 0.0
    %580 = vmatprep.subr.mxu0 0.0
    %581 = vmatpush1.xpose.msra.mxu0 0.0
    %582 = vmatprep.subr.mxu0 0.0
    %583 = vmatpush1.xpose.msra.mxu0 0.0
    %584 = vmatprep.subr.mxu0 0.0
    %585 = vmatpush1.xpose.msra.mxu0 0.0
    %586 = vmatprep.subr.mxu0 0.0
    %587 = vmatpush1.xpose.msra.mxu0 0.0
    %588 = vmatprep.subr.mxu0 0.0
    %589 = vmatpush1.xpose.msra.mxu0 0.0
    %590 = vmatprep.subr.mxu0 0.0
    %591 = vmatpush1.xpose.msra.mxu0 0.0
    %592 = vmatprep.mubr.f32.mxu0 0.0
    %593 = vmatmul.mubr.f32.gmra.mrb[0].mxu0 %v304
    %v594 = vpop.f32.mrb[0].mxu0
    %v595 = vadd.f32 0.0, %v594
    %v596 = vpop.f32.mrb[0].mxu0
    %597 = vdwg.mxu0
    %v598 = vmul.f32 %v376, 0.35355338
    %v599 = vmul.f32 %v449, 0.35355338
    %v600 = vmul.f32 %v522, 0.35355338
    %v601 = vmul.f32 %v595, 0.35355338
    %vm602 = vcmask 64512
    %v603 = vsel %vm602, %v598, -inf
    %604 = vmax.xlane.f32.xlu0 %v603
    %v605 = vpop.xlane.xlu0 %604
    %v606 = vsel %vm602, %v599, -inf
    %607 = vmax.xlane.f32.xlu0 %v606
    %v608 = vpop.xlane.xlu0 %607
    %v609 = vsel %vm602, %v600, -inf
    %610 = vmax.xlane.f32.xlu0 %v609
    %v611 = vpop.xlane.xlu0 %610
    %v612 = vsel %vm602, %v601, -inf
    %613 = vmax.xlane.f32.xlu0 %v612
    %v614 = vpop.xlane.xlu0 %613
    %v615 = vsub.f32 %v598, %v605
    %v616 = vsub.f32 %v599, %v608
    %v617 = vsub.f32 %v600, %v611
    %v618 = vsub.f32 %v601, %v614
    %v619 = vmul.f32 %v615, 1.442695
    %v620 = vpow.pop %v619
    %v621 = vmul.f32 %v616, 1.442695
    %v622 = vpow.pop %v621
    %v623 = vmul.f32 %v617, 1.442695
    %v624 = vpow.pop %v623
    %v625 = vmul.f32 %v618, 1.442695
    %v626 = vpow.pop %v625
    %v627 = vsel %vm602, %v620, 0.0
    %628 = vadd.xlane.f32.xlu0 %v627
    %v629 = vpop.xlane.xlu0 %628
    %v630 = vsel %vm602, %v622, 0.0
    %631 = vadd.xlane.f32.xlu0 %v630
    %v632 = vpop.xlane.xlu0 %631
    %v633 = vsel %vm602, %v624, 0.0
    %634 = vadd.xlane.f32.xlu0 %v633
    %v635 = vpop.xlane.xlu0 %634
    %v636 = vsel %vm602, %v626, 0.0
    %637 = vadd.xlane.f32.xlu0 %v636
    %v638 = vpop.xlane.xlu0 %637
    %v639 = vrcp.pop %v629
    %v640 = vrcp.pop %v632
    %v641 = vrcp.pop %v635
    %v642 = vrcp.pop %v638
    %v643 = vmul.f32 %v620, %v639
    %v644 = vmul.f32 %v622, %v640
    %v645 = vmul.f32 %v624, %v641
    %v646 = vmul.f32 %v626, %v642
    %v648 = vsel %vm602, %v643, 0
    %650 = vmatprep.subr.mxu0 0.0
    %651 = vmatpush1.msra.mxu0 %v299
    %652 = vmatprep.subr.mxu0 0.0
    %653 = vmatpush1.msra.mxu0 0.0
    %654 = vmatprep.subr.mxu0 0.0
    %655 = vmatpush1.msra.mxu0 0.0
    %656 = vmatprep.subr.mxu0 0.0
    %657 = vmatpush1.msra.mxu0 0.0
    %658 = vmatprep.subr.mxu0 0.0
    %659 = vmatpush1.msra.mxu0 0.0
    %660 = vmatprep.subr.mxu0 0.0
    %661 = vmatpush1.msra.mxu0 0.0
    %662 = vmatprep.subr.mxu0 0.0
    %663 = vmatpush1.msra.mxu0 0.0
    %664 = vmatprep.subr.mxu0 0.0
    %665 = vmatpush1.msra.mxu0 0.0
    %666 = vmatprep.subr.mxu0 0.0
    %667 = vmatpush1.msra.mxu0 0.0
    %668 = vmatprep.subr.mxu0 0.0
    %669 = vmatpush1.msra.mxu0 0.0
    %670 = vmatprep.subr.mxu0 0.0
    %671 = vmatpush1.msra.mxu0 0.0
    %672 = vmatprep.subr.mxu0 0.0
    %673 = vmatpush1.msra.mxu0 0.0
    %674 = vmatprep.subr.mxu0 0.0
    %675 = vmatpush1.msra.mxu0 0.0
    %676 = vmatprep.subr.mxu0 0.0
    %677 = vmatpush1.msra.mxu0 0.0
    %678 = vmatprep.subr.mxu0 0.0
    %679 = vmatpush1.msra.mxu0 0.0
    %680 = vmatprep.subr.mxu0 0.0
    %681 = vmatpush1.msra.mxu0 0.0
    %682 = vmatprep.subr.mxu0 0.0
    %683 = vmatpush1.msra.mxu0 0.0
    %684 = vmatprep.subr.mxu0 0.0
    %685 = vmatpush1.msra.mxu0 0.0
    %686 = vmatprep.subr.mxu0 0.0
    %687 = vmatpush1.msra.mxu0 0.0
    %688 = vmatprep.subr.mxu0 0.0
    %689 = vmatpush1.msra.mxu0 0.0
    %690 = vmatprep.subr.mxu0 0.0
    %691 = vmatpush1.msra.mxu0 0.0
    %692 = vmatprep.subr.mxu0 0.0
    %693 = vmatpush1.msra.mxu0 0.0
    %694 = vmatprep.subr.mxu0 0.0
    %695 = vmatpush1.msra.mxu0 0.0
    %696 = vmatprep.subr.mxu0 0.0
    %697 = vmatpush1.msra.mxu0 0.0
    %698 = vmatprep.subr.mxu0 0.0
    %699 = vmatpush1.msra.mxu0 0.0
    %700 = vmatprep.subr.mxu0 0.0
    %701 = vmatpush1.msra.mxu0 0.0
    %702 = vmatprep.subr.mxu0 0.0
    %703 = vmatpush1.msra.mxu0 0.0
    %704 = vmatprep.subr.mxu0 0.0
    %705 = vmatpush1.msra.mxu0 0.0
    %706 = vmatprep.subr.mxu0 0.0
    %707 = vmatpush1.msra.mxu0 0.0
    %708 = vmatprep.subr.mxu0 0.0
    %709 = vmatpush1.msra.mxu0 0.0
    %710 = vmatprep.subr.mxu0 0.0
    %711 = vmatpush1.msra.mxu0 0.0
    %712 = vmatprep.subr.mxu0 0.0
    %713 = vmatpush1.msra.mxu0 0.0
    %714 = vmatprep.mubr.f32.mxu0 0.0
    %715 = vmatmul.mubr.f32.gmra.mrb[0].mxu0 %v648
    %v716 = vpop.f32.mrb[0].mxu0
    %v717 = vadd.f32 0.0, %v716
    %v718 = vpop.f32.mrb[0].mxu0
    %719 = vdwg.mxu0
    %v721 = vsel %vm602, %v644, 0
    %723 = vmatprep.subr.mxu0 0.0
    %724 = vmatpush1.msra.mxu0 %v300
    %725 = vmatprep.subr.mxu0 0.0
    %726 = vmatpush1.msra.mxu0 0.0
    %727 = vmatprep.subr.mxu0 0.0
    %728 = vmatpush1.msra.mxu0 0.0
    %729 = vmatprep.subr.mxu0 0.0
    %730 = vmatpush1.msra.mxu0 0.0
    %731 = vmatprep.subr.mxu0 0.0
    %732 = vmatpush1.msra.mxu0 0.0
    %733 = vmatprep.subr.mxu0 0.0
    %734 = vmatpush1.msra.mxu0 0.0
    %735 = vmatprep.subr.mxu0 0.0
    %736 = vmatpush1.msra.mxu0 0.0
    %737 = vmatprep.subr.mxu0 0.0
    %738 = vmatpush1.msra.mxu0 0.0
    %739 = vmatprep.subr.mxu0 0.0
    %740 = vmatpush1.msra.mxu0 0.0
    %741 = vmatprep.subr.mxu0 0.0
    %742 = vmatpush1.msra.mxu0 0.0
    %743 = vmatprep.subr.mxu0 0.0
    %744 = vmatpush1.msra.mxu0 0.0
    %745 = vmatprep.subr.mxu0 0.0
    %746 = vmatpush1.msra.mxu0 0.0
    %747 = vmatprep.subr.mxu0 0.0
    %748 = vmatpush1.msra.mxu0 0.0
    %749 = vmatprep.subr.mxu0 0.0
    %750 = vmatpush1.msra.mxu0 0.0
    %751 = vmatprep.subr.mxu0 0.0
    %752 = vmatpush1.msra.mxu0 0.0
    %753 = vmatprep.subr.mxu0 0.0
    %754 = vmatpush1.msra.mxu0 0.0
    %755 = vmatprep.subr.mxu0 0.0
    %756 = vmatpush1.msra.mxu0 0.0
    %757 = vmatprep.subr.mxu0 0.0
    %758 = vmatpush1.msra.mxu0 0.0
    %759 = vmatprep.subr.mxu0 0.0
    %760 = vmatpush1.msra.mxu0 0.0
    %761 = vmatprep.subr.mxu0 0.0
    %762 = vmatpush1.msra.mxu0 0.0
    %763 = vmatprep.subr.mxu0 0.0
    %764 = vmatpush1.msra.mxu0 0.0
    %765 = vmatprep.subr.mxu0 0.0
    %766 = vmatpush1.msra.mxu0 0.0
    %767 = vmatprep.subr.mxu0 0.0
    %768 = vmatpush1.msra.mxu0 0.0
    %769 = vmatprep.subr.mxu0 0.0
    %770 = vmatpush1.msra.mxu0 0.0
    %771 = vmatprep.subr.mxu0 0.0
    %772 = vmatpush1.msra.mxu0 0.0
    %773 = vmatprep.subr.mxu0 0.0
    %774 = vmatpush1.msra.mxu0 0.0
    %775 = vmatprep.subr.mxu0 0.0
    %776 = vmatpush1.msra.mxu0 0.0
    %777 = vmatprep.subr.mxu0 0.0
    %778 = vmatpush1.msra.mxu0 0.0
    %779 = vmatprep.subr.mxu0 0.0
    %780 = vmatpush1.msra.mxu0 0.0
    %781 = vmatprep.subr.mxu0 0.0
    %782 = vmatpush1.msra.mxu0 0.0
    %783 = vmatprep.subr.mxu0 0.0
    %784 = vmatpush1.msra.mxu0 0.0
    %785 = vmatprep.subr.mxu0 0.0
    %786 = vmatpush1.msra.mxu0 0.0
    %787 = vmatprep.mubr.f32.mxu0 0.0
    %788 = vmatmul.mubr.f32.gmra.mrb[0].mxu0 %v721
    %v789 = vpop.f32.mrb[0].mxu0
    %v790 = vadd.f32 0.0, %v789
    %v791 = vpop.f32.mrb[0].mxu0
    %792 = vdwg.mxu0
    %v794 = vsel %vm602, %v645, 0
    %796 = vmatprep.subr.mxu0 0.0
    %797 = vmatpush1.msra.mxu0 %v301
    %798 = vmatprep.subr.mxu0 0.0
    %799 = vmatpush1.msra.mxu0 0.0
    %800 = vmatprep.subr.mxu0 0.0
    %801 = vmatpush1.msra.mxu0 0.0
    %802 = vmatprep.subr.mxu0 0.0
    %803 = vmatpush1.msra.mxu0 0.0
    %804 = vmatprep.subr.mxu0 0.0
    %805 = vmatpush1.msra.mxu0 0.0
    %806 = vmatprep.subr.mxu0 0.0
    %807 = vmatpush1.msra.mxu0 0.0
    %808 = vmatprep.subr.mxu0 0.0
    %809 = vmatpush1.msra.mxu0 0.0
    %810 = vmatprep.subr.mxu0 0.0
    %811 = vmatpush1.msra.mxu0 0.0
    %812 = vmatprep.subr.mxu0 0.0
    %813 = vmatpush1.msra.mxu0 0.0
    %814 = vmatprep.subr.mxu0 0.0
    %815 = vmatpush1.msra.mxu0 0.0
    %816 = vmatprep.subr.mxu0 0.0
    %817 = vmatpush1.msra.mxu0 0.0
    %818 = vmatprep.subr.mxu0 0.0
    %819 = vmatpush1.msra.mxu0 0.0
    %820 = vmatprep.subr.mxu0 0.0
    %821 = vmatpush1.msra.mxu0 0.0
    %822 = vmatprep.subr.mxu0 0.0
    %823 = vmatpush1.msra.mxu0 0.0
    %824 = vmatprep.subr.mxu0 0.0
    %825 = vmatpush1.msra.mxu0 0.0
    %826 = vmatprep.subr.mxu0 0.0
    %827 = vmatpush1.msra.mxu0 0.0
    %828 = vmatprep.subr.mxu0 0.0
    %829 = vmatpush1.msra.mxu0 0.0
    %830 = vmatprep.subr.mxu0 0.0
    %831 = vmatpush1.msra.mxu0 0.0
    %832 = vmatprep.subr.mxu0 0.0
    %833 = vmatpush1.msra.mxu0 0.0
    %834 = vmatprep.subr.mxu0 0.0
    %835 = vmatpush1.msra.mxu0 0.0
    %836 = vmatprep.subr.mxu0 0.0
    %837 = vmatpush1.msra.mxu0 0.0
    %838 = vmatprep.subr.mxu0 0.0
    %839 = vmatpush1.msra.mxu0 0.0
    %840 = vmatprep.subr.mxu0 0.0
    %841 = vmatpush1.msra.mxu0 0.0
    %842 = vmatprep.subr.mxu0 0.0
    %843 = vmatpush1.msra.mxu0 0.0
    %844 = vmatprep.subr.mxu0 0.0
    %845 = vmatpush1.msra.mxu0 0.0
    %846 = vmatprep.subr.mxu0 0.0
    %847 = vmatpush1.msra.mxu0 0.0
    %848 = vmatprep.subr.mxu0 0.0
    %849 = vmatpush1.msra.mxu0 0.0
    %850 = vmatprep.subr.mxu0 0.0
    %851 = vmatpush1.msra.mxu0 0.0
    %852 = vmatprep.subr.mxu0 0.0
    %853 = vmatpush1.msra.mxu0 0.0
    %854 = vmatprep.subr.mxu0 0.0
    %855 = vmatpush1.msra.mxu0 0.0
    %856 = vmatprep.subr.mxu0 0.0
    %857 = vmatpush1.msra.mxu0 0.0
    %858 = vmatprep.subr.mxu0 0.0
    %859 = vmatpush1.msra.mxu0 0.0
    %860 = vmatprep.mubr.f32.mxu0 0.0
    %861 = vmatmul.mubr.f32.gmra.mrb[0].mxu0 %v794
    %v862 = vpop.f32.mrb[0].mxu0
    %v863 = vadd.f32 0.0, %v862
    %v864 = vpop.f32.mrb[0].mxu0
    %865 = vdwg.mxu0
    %v867 = vsel %vm602, %v646, 0
    %869 = vmatprep.subr.mxu0 0.0
    %870 = vmatpush1.msra.mxu0 %v302
    %871 = vmatprep.subr.mxu0 0.0
    %872 = vmatpush1.msra.mxu0 0.0
    %873 = vmatprep.subr.mxu0 0.0
    %874 = vmatpush1.msra.mxu0 0.0
    %875 = vmatprep.subr.mxu0 0.0
    %876 = vmatpush1.msra.mxu0 0.0
    %877 = vmatprep.subr.mxu0 0.0
    %878 = vmatpush1.msra.mxu0 0.0
    %879 = vmatprep.subr.mxu0 0.0
    %880 = vmatpush1.msra.mxu0 0.0
    %881 = vmatprep.subr.mxu0 0.0
    %882 = vmatpush1.msra.mxu0 0.0
    %883 = vmatprep.subr.mxu0 0.0
    %884 = vmatpush1.msra.mxu0 0.0
    %885 = vmatprep.subr.mxu0 0.0
    %886 = vmatpush1.msra.mxu0 0.0
    %887 = vmatprep.subr.mxu0 0.0
    %888 = vmatpush1.msra.mxu0 0.0
    %889 = vmatprep.subr.mxu0 0.0
    %890 = vmatpush1.msra.mxu0 0.0
    %891 = vmatprep.subr.mxu0 0.0
    %892 = vmatpush1.msra.mxu0 0.0
    %893 = vmatprep.subr.mxu0 0.0
    %894 = vmatpush1.msra.mxu0 0.0
    %895 = vmatprep.subr.mxu0 0.0
    %896 = vmatpush1.msra.mxu0 0.0
    %897 = vmatprep.subr.mxu0 0.0
    %898 = vmatpush1.msra.mxu0 0.0
    %899 = vmatprep.subr.mxu0 0.0
    %900 = vmatpush1.msra.mxu0 0.0
    %901 = vmatprep.subr.mxu0 0.0
    %902 = vmatpush1.msra.mxu0 0.0
    %903 = vmatprep.subr.mxu0 0.0
    %904 = vmatpush1.msra.mxu0 0.0
    %905 = vmatprep.subr.mxu0 0.0
    %906 = vmatpush1.msra.mxu0 0.0
    %907 = vmatprep.subr.mxu0 0.0
    %908 = vmatpush1.msra.mxu0 0.0
    %909 = vmatprep.subr.mxu0 0.0
    %910 = vmatpush1.msra.mxu0 0.0
    %911 = vmatprep.subr.mxu0 0.0
    %912 = vmatpush1.msra.mxu0 0.0
    %913 = vmatprep.subr.mxu0 0.0
    %914 = vmatpush1.msra.mxu0 0.0
    %915 = vmatprep.subr.mxu0 0.0
    %916 = vmatpush1.msra.mxu0 0.0
    %917 = vmatprep.subr.mxu0 0.0
    %918 = vmatpush1.msra.mxu0 0.0
    %919 = vmatprep.subr.mxu0 0.0
    %920 = vmatpush1.msra.mxu0 0.0
    %921 = vmatprep.subr.mxu0 0.0
    %922 = vmatpush1.msra.mxu0 0.0
    %923 = vmatprep.subr.mxu0 0.0
    %924 = vmatpush1.msra.mxu0 0.0
    %925 = vmatprep.subr.mxu0 0.0
    %926 = vmatpush1.msra.mxu0 0.0
    %927 = vmatprep.subr.mxu0 0.0
    %928 = vmatpush1.msra.mxu0 0.0
    %929 = vmatprep.subr.mxu0 0.0
    %930 = vmatpush1.msra.mxu0 0.0
    %931 = vmatprep.subr.mxu0 0.0
    %932 = vmatpush1.msra.mxu0 0.0
    %933 = vmatprep.mubr.f32.mxu0 0.0
    %934 = vmatmul.mubr.f32.gmra.mrb[0].mxu0 %v867
    %v935 = vpop.f32.mrb[0].mxu0
    %v936 = vadd.f32 0.0, %v935
    %v937 = vpop.f32.mrb[0].mxu0
    %938 = vdwg.mxu0
    %v939 = vsel %vm59, %v717, 0.0
    %v940 = vsel %vm59, %v790, 0.0
    %v941 = vadd.f32 %v939, %v940
    %v942 = vsel %vm59, %v863, 0.0
    %v943 = vadd.f32 %v941, %v942
    %v944 = vsel %vm59, %v936, 0.0
    %v945 = vadd.f32 %v943, %v944
    %946 = vst.msk [vmem:[#allocation2] sm:$0xff] %vm59, %v945
    %v947 = vmul.f32 %v213, %v291
    %v948 = vmul.f32 %v213, %v292
    %v949 = vmul.f32 %v213, %v293
    %v950 = vmul.f32 %v213, %v294
    %v951 = vmul.f32 %v288, %v291
    %v952 = vmul.f32 %v288, %v292
    %v953 = vmul.f32 %v288, %v293
    %v954 = vmul.f32 %v288, %v294
    %v956 = vsel %vm59, %v138, 0
    %v959 = vsel %vm59, %v947, 0
    %961 = vmatprep.subr.mxu0 0.0
    %962 = vmatpush1.xpose.msra.mxu0 %v959
    %963 = vmatprep.subr.mxu0 0.0
    %964 = vmatpush1.xpose.msra.mxu0 0.0
    %965 = vmatprep.subr.mxu0 0.0
    %966 = vmatpush1.xpose.msra.mxu0 0.0
    %967 = vmatprep.subr.mxu0 0.0
    %968 = vmatpush1.xpose.msra.mxu0 0.0
    %969 = vmatprep.subr.mxu0 0.0
    %970 = vmatpush1.xpose.msra.mxu0 0.0
    %971 = vmatprep.subr.mxu0 0.0
    %972 = vmatpush1.xpose.msra.mxu0 0.0
    %973 = vmatprep.subr.mxu0 0.0
    %974 = vmatpush1.xpose.msra.mxu0 0.0
    %975 = vmatprep.subr.mxu0 0.0
    %976 = vmatpush1.xpose.msra.mxu0 0.0
    %977 = vmatprep.subr.mxu0 0.0
    %978 = vmatpush1.xpose.msra.mxu0 0.0
    %979 = vmatprep.subr.mxu0 0.0
    %980 = vmatpush1.xpose.msra.mxu0 0.0
    %981 = vmatprep.subr.mxu0 0.0
    %982 = vmatpush1.xpose.msra.mxu0 0.0
    %983 = vmatprep.subr.mxu0 0.0
    %984 = vmatpush1.xpose.msra.mxu0 0.0
    %985 = vmatprep.subr.mxu0 0.0
    %986 = vmatpush1.xpose.msra.mxu0 0.0
    %987 = vmatprep.subr.mxu0 0.0
    %988 = vmatpush1.xpose.msra.mxu0 0.0
    %989 = vmatprep.subr.mxu0 0.0
    %990 = vmatpush1.xpose.msra.mxu0 0.0
    %991 = vmatprep.subr.mxu0 0.0
    %992 = vmatpush1.xpose.msra.mxu0 0.0
    %993 = vmatprep.subr.mxu0 0.0
    %994 = vmatpush1.xpose.msra.mxu0 0.0
    %995 = vmatprep.subr.mxu0 0.0
    %996 = vmatpush1.xpose.msra.mxu0 0.0
    %997 = vmatprep.subr.mxu0 0.0
    %998 = vmatpush1.xpose.msra.mxu0 0.0
    %999 = vmatprep.subr.mxu0 0.0
    %1000 = vmatpush1.xpose.msra.mxu0 0.0
    %1001 = vmatprep.subr.mxu0 0.0
    %1002 = vmatpush1.xpose.msra.mxu0 0.0
    %1003 = vmatprep.subr.mxu0 0.0
    %1004 = vmatpush1.xpose.msra.mxu0 0.0
    %1005 = vmatprep.subr.mxu0 0.0
    %1006 = vmatpush1.xpose.msra.mxu0 0.0
    %1007 = vmatprep.subr.mxu0 0.0
    %1008 = vmatpush1.xpose.msra.mxu0 0.0
    %1009 = vmatprep.subr.mxu0 0.0
    %1010 = vmatpush1.xpose.msra.mxu0 0.0
    %1011 = vmatprep.subr.mxu0 0.0
    %1012 = vmatpush1.xpose.msra.mxu0 0.0
    %1013 = vmatprep.subr.mxu0 0.0
    %1014 = vmatpush1.xpose.msra.mxu0 0.0
    %1015 = vmatprep.subr.mxu0 0.0
    %1016 = vmatpush1.xpose.msra.mxu0 0.0
    %1017 = vmatprep.subr.mxu0 0.0
    %1018 = vmatpush1.xpose.msra.mxu0 0.0
    %1019 = vmatprep.subr.mxu0 0.0
    %1020 = vmatpush1.xpose.msra.mxu0 0.0
    %1021 = vmatprep.subr.mxu0 0.0
    %1022 = vmatpush1.xpose.msra.mxu0 0.0
    %1023 = vmatprep.subr.mxu0 0.0
    %1024 = vmatpush1.xpose.msra.mxu0 0.0
    %1025 = vmatprep.mubr.f32.mxu0 0.0
    %1026 = vmatmul.mubr.f32.gmra.mrb[0].mxu0 %v956
    %v1027 = vpop.f32.mrb[0].mxu0
    %v1028 = vadd.f32 0.0, %v1027
    %v1029 = vpop.f32.mrb[0].mxu0
    %1030 = vdwg.mxu0
    %v1032 = vsel %vm59, %v948, 0
    %1034 = vmatprep.subr.mxu0 0.0
    %1035 = vmatpush1.xpose.msra.mxu0 %v1032
    %1036 = vmatprep.subr.mxu0 0.0
    %1037 = vmatpush1.xpose.msra.mxu0 0.0
    %1038 = vmatprep.subr.mxu0 0.0
    %1039 = vmatpush1.xpose.msra.mxu0 0.0
    %1040 = vmatprep.subr.mxu0 0.0
    %1041 = vmatpush1.xpose.msra.mxu0 0.0
    %1042 = vmatprep.subr.mxu0 0.0
    %1043 = vmatpush1.xpose.msra.mxu0 0.0
    %1044 = vmatprep.subr.mxu0 0.0
    %1045 = vmatpush1.xpose.msra.mxu0 0.0
    %1046 = vmatprep.subr.mxu0 0.0
    %1047 = vmatpush1.xpose.msra.mxu0 0.0
    %1048 = vmatprep.subr.mxu0 0.0
    %1049 = vmatpush1.xpose.msra.mxu0 0.0
    %1050 = vmatprep.subr.mxu0 0.0
    %1051 = vmatpush1.xpose.msra.mxu0 0.0
    %1052 = vmatprep.subr.mxu0 0.0
    %1053 = vmatpush1.xpose.msra.mxu0 0.0
    %1054 = vmatprep.subr.mxu0 0.0
    %1055 = vmatpush1.xpose.msra.mxu0 0.0
    %1056 = vmatprep.subr.mxu0 0.0
    %1057 = vmatpush1.xpose.msra.mxu0 0.0
    %1058 = vmatprep.subr.mxu0 0.0
    %1059 = vmatpush1.xpose.msra.mxu0 0.0
    %1060 = vmatprep.subr.mxu0 0.0
    %1061 = vmatpush1.xpose.msra.mxu0 0.0
    %1062 = vmatprep.subr.mxu0 0.0
    %1063 = vmatpush1.xpose.msra.mxu0 0.0
    %1064 = vmatprep.subr.mxu0 0.0
    %1065 = vmatpush1.xpose.msra.mxu0 0.0
    %1066 = vmatprep.subr.mxu0 0.0
    %1067 = vmatpush1.xpose.msra.mxu0 0.0
    %1068 = vmatprep.subr.mxu0 0.0
    %1069 = vmatpush1.xpose.msra.mxu0 0.0
    %1070 = vmatprep.subr.mxu0 0.0
    %1071 = vmatpush1.xpose.msra.mxu0 0.0
    %1072 = vmatprep.subr.mxu0 0.0
    %1073 = vmatpush1.xpose.msra.mxu0 0.0
    %1074 = vmatprep.subr.mxu0 0.0
    %1075 = vmatpush1.xpose.msra.mxu0 0.0
    %1076 = vmatprep.subr.mxu0 0.0
    %1077 = vmatpush1.xpose.msra.mxu0 0.0
    %1078 = vmatprep.subr.mxu0 0.0
    %1079 = vmatpush1.xpose.msra.mxu0 0.0
    %1080 = vmatprep.subr.mxu0 0.0
    %1081 = vmatpush1.xpose.msra.mxu0 0.0
    %1082 = vmatprep.subr.mxu0 0.0
    %1083 = vmatpush1.xpose.msra.mxu0 0.0
    %1084 = vmatprep.subr.mxu0 0.0
    %1085 = vmatpush1.xpose.msra.mxu0 0.0
    %1086 = vmatprep.subr.mxu0 0.0
    %1087 = vmatpush1.xpose.msra.mxu0 0.0
    %1088 = vmatprep.subr.mxu0 0.0
    %1089 = vmatpush1.xpose.msra.mxu0 0.0
    %1090 = vmatprep.subr.mxu0 0.0
    %1091 = vmatpush1.xpose.msra.mxu0 0.0
    %1092 = vmatprep.subr.mxu0 0.0
    %1093 = vmatpush1.xpose.msra.mxu0 0.0
    %1094 = vmatprep.subr.mxu0 0.0
    %1095 = vmatpush1.xpose.msra.mxu0 0.0
    %1096 = vmatprep.subr.mxu0 0.0
    %1097 = vmatpush1.xpose.msra.mxu0 0.0
    %1098 = vmatprep.mubr.f32.mxu0 0.0
    %1099 = vmatmul.mubr.f32.gmra.mrb[0].mxu0 %v956
    %v1100 = vpop.f32.mrb[0].mxu0
    %v1101 = vadd.f32 0.0, %v1100
    %v1102 = vpop.f32.mrb[0].mxu0
    %1103 = vdwg.mxu0
    %v1105 = vsel %vm59, %v949, 0
    %1107 = vmatprep.subr.mxu0 0.0
    %1108 = vmatpush1.xpose.msra.mxu0 %v1105
    %1109 = vmatprep.subr.mxu0 0.0
    %1110 = vmatpush1.xpose.msra.mxu0 0.0
    %1111 = vmatprep.subr.mxu0 0.0
    %1112 = vmatpush1.xpose.msra.mxu0 0.0
    %1113 = vmatprep.subr.mxu0 0.0
    %1114 = vmatpush1.xpose.msra.mxu0 0.0
    %1115 = vmatprep.subr.mxu0 0.0
    %1116 = vmatpush1.xpose.msra.mxu0 0.0
    %1117 = vmatprep.subr.mxu0 0.0
    %1118 = vmatpush1.xpose.msra.mxu0 0.0
    %1119 = vmatprep.subr.mxu0 0.0
    %1120 = vmatpush1.xpose.msra.mxu0 0.0
    %1121 = vmatprep.subr.mxu0 0.0
    %1122 = vmatpush1.xpose.msra.mxu0 0.0
    %1123 = vmatprep.subr.mxu0 0.0
    %1124 = vmatpush1.xpose.msra.mxu0 0.0
    %1125 = vmatprep.subr.mxu0 0.0
    %1126 = vmatpush1.xpose.msra.mxu0 0.0
    %1127 = vmatprep.subr.mxu0 0.0
    %1128 = vmatpush1.xpose.msra.mxu0 0.0
    %1129 = vmatprep.subr.mxu0 0.0
    %1130 = vmatpush1.xpose.msra.mxu0 0.0
    %1131 = vmatprep.subr.mxu0 0.0
    %1132 = vmatpush1.xpose.msra.mxu0 0.0
    %1133 = vmatprep.subr.mxu0 0.0
    %1134 = vmatpush1.xpose.msra.mxu0 0.0
    %1135 = vmatprep.subr.mxu0 0.0
    %1136 = vmatpush1.xpose.msra.mxu0 0.0
    %1137 = vmatprep.subr.mxu0 0.0
    %1138 = vmatpush1.xpose.msra.mxu0 0.0
    %1139 = vmatprep.subr.mxu0 0.0
    %1140 = vmatpush1.xpose.msra.mxu0 0.0
    %1141 = vmatprep.subr.mxu0 0.0
    %1142 = vmatpush1.xpose.msra.mxu0 0.0
    %1143 = vmatprep.subr.mxu0 0.0
    %1144 = vmatpush1.xpose.msra.mxu0 0.0
    %1145 = vmatprep.subr.mxu0 0.0
    %1146 = vmatpush1.xpose.msra.mxu0 0.0
    %1147 = vmatprep.subr.mxu0 0.0
    %1148 = vmatpush1.xpose.msra.mxu0 0.0
    %1149 = vmatprep.subr.mxu0 0.0
    %1150 = vmatpush1.xpose.msra.mxu0 0.0
    %1151 = vmatprep.subr.mxu0 0.0
    %1152 = vmatpush1.xpose.msra.mxu0 0.0
    %1153 = vmatprep.subr.mxu0 0.0
    %1154 = vmatpush1.xpose.msra.mxu0 0.0
    %1155 = vmatprep.subr.mxu0 0.0
    %1156 = vmatpush1.xpose.msra.mxu0 0.0
    %1157 = vmatprep.subr.mxu0 0.0
    %1158 = vmatpush1.xpose.msra.mxu0 0.0
    %1159 = vmatprep.subr.mxu0 0.0
    %1160 = vmatpush1.xpose.msra.mxu0 0.0
    %1161 = vmatprep.subr.mxu0 0.0
    %1162 = vmatpush1.xpose.msra.mxu0 0.0
    %1163 = vmatprep.subr.mxu0 0.0
    %1164 = vmatpush1.xpose.msra.mxu0 0.0
    %1165 = vmatprep.subr.mxu0 0.0
    %1166 = vmatpush1.xpose.msra.mxu0 0.0
    %1167 = vmatprep.subr.mxu0 0.0
    %1168 = vmatpush1.xpose.msra.mxu0 0.0
    %1169 = vmatprep.subr.mxu0 0.0
    %1170 = vmatpush1.xpose.msra.mxu0 0.0
    %1171 = vmatprep.mubr.f32.mxu0 0.0
    %1172 = vmatmul.mubr.f32.gmra.mrb[0].mxu0 %v956
    %v1173 = vpop.f32.mrb[0].mxu0
    %v1174 = vadd.f32 0.0, %v1173
    %v1175 = vpop.f32.mrb[0].mxu0
    %1176 = vdwg.mxu0
    %v1178 = vsel %vm59, %v950, 0
    %1180 = vmatprep.subr.mxu0 0.0
    %1181 = vmatpush1.xpose.msra.mxu0 %v1178
    %1182 = vmatprep.subr.mxu0 0.0
    %1183 = vmatpush1.xpose.msra.mxu0 0.0
    %1184 = vmatprep.subr.mxu0 0.0
    %1185 = vmatpush1.xpose.msra.mxu0 0.0
    %1186 = vmatprep.subr.mxu0 0.0
    %1187 = vmatpush1.xpose.msra.mxu0 0.0
    %1188 = vmatprep.subr.mxu0 0.0
    %1189 = vmatpush1.xpose.msra.mxu0 0.0
    %1190 = vmatprep.subr.mxu0 0.0
    %1191 = vmatpush1.xpose.msra.mxu0 0.0
    %1192 = vmatprep.subr.mxu0 0.0
    %1193 = vmatpush1.xpose.msra.mxu0 0.0
    %1194 = vmatprep.subr.mxu0 0.0
    %1195 = vmatpush1.xpose.msra.mxu0 0.0
    %1196 = vmatprep.subr.mxu0 0.0
    %1197 = vmatpush1.xpose.msra.mxu0 0.0
    %1198 = vmatprep.subr.mxu0 0.0
    %1199 = vmatpush1.xpose.msra.mxu0 0.0
    %1200 = vmatprep.subr.mxu0 0.0
    %1201 = vmatpush1.xpose.msra.mxu0 0.0
    %1202 = vmatprep.subr.mxu0 0.0
    %1203 = vmatpush1.xpose.msra.mxu0 0.0
    %1204 = vmatprep.subr.mxu0 0.0
    %1205 = vmatpush1.xpose.msra.mxu0 0.0
    %1206 = vmatprep.subr.mxu0 0.0
    %1207 = vmatpush1.xpose.msra.mxu0 0.0
    %1208 = vmatprep.subr.mxu0 0.0
    %1209 = vmatpush1.xpose.msra.mxu0 0.0
    %1210 = vmatprep.subr.mxu0 0.0
    %1211 = vmatpush1.xpose.msra.mxu0 0.0
    %1212 = vmatprep.subr.mxu0 0.0
    %1213 = vmatpush1.xpose.msra.mxu0 0.0
    %1214 = vmatprep.subr.mxu0 0.0
    %1215 = vmatpush1.xpose.msra.mxu0 0.0
    %1216 = vmatprep.subr.mxu0 0.0
    %1217 = vmatpush1.xpose.msra.mxu0 0.0
    %1218 = vmatprep.subr.mxu0 0.0
    %1219 = vmatpush1.xpose.msra.mxu0 0.0
    %1220 = vmatprep.subr.mxu0 0.0
    %1221 = vmatpush1.xpose.msra.mxu0 0.0
    %1222 = vmatprep.subr.mxu0 0.0
    %1223 = vmatpush1.xpose.msra.mxu0 0.0
    %1224 = vmatprep.subr.mxu0 0.0
    %1225 = vmatpush1.xpose.msra.mxu0 0.0
    %1226 = vmatprep.subr.mxu0 0.0
    %1227 = vmatpush1.xpose.msra.mxu0 0.0
    %1228 = vmatprep.subr.mxu0 0.0
    %1229 = vmatpush1.xpose.msra.mxu0 0.0
    %1230 = vmatprep.subr.mxu0 0.0
    %1231 = vmatpush1.xpose.msra.mxu0 0.0
    %1232 = vmatprep.subr.mxu0 0.0
    %1233 = vmatpush1.xpose.msra.mxu0 0.0
    %1234 = vmatprep.subr.mxu0 0.0
    %1235 = vmatpush1.xpose.msra.mxu0 0.0
    %1236 = vmatprep.subr.mxu0 0.0
    %1237 = vmatpush1.xpose.msra.mxu0 0.0
    %1238 = vmatprep.subr.mxu0 0.0
    %1239 = vmatpush1.xpose.msra.mxu0 0.0
    %1240 = vmatprep.subr.mxu0 0.0
    %1241 = vmatpush1.xpose.msra.mxu0 0.0
    %1242 = vmatprep.subr.mxu0 0.0
    %1243 = vmatpush1.xpose.msra.mxu0 0.0
    %1244 = vmatprep.mubr.f32.mxu0 0.0
    %1245 = vmatmul.mubr.f32.gmra.mrb[0].mxu0 %v956
    %v1246 = vpop.f32.mrb[0].mxu0
    %v1247 = vadd.f32 0.0, %v1246
    %v1248 = vpop.f32.mrb[0].mxu0
    %1249 = vdwg.mxu0
    %v1250 = vmul.f32 %v1028, 0.35355338
    %v1251 = vmul.f32 %v1101, 0.35355338
    %v1252 = vmul.f32 %v1174, 0.35355338
    %v1253 = vmul.f32 %v1247, 0.35355338
    %v1254 = vsel %vm602, %v1250, -inf
    %1255 = vmax.xlane.f32.xlu0 %v1254
    %v1256 = vpop.xlane.xlu0 %1255
    %v1257 = vsel %vm602, %v1251, -inf
    %1258 = vmax.xlane.f32.xlu0 %v1257
    %v1259 = vpop.xlane.xlu0 %1258
    %v1260 = vsel %vm602, %v1252, -inf
    %1261 = vmax.xlane.f32.xlu0 %v1260
    %v1262 = vpop.xlane.xlu0 %1261
    %v1263 = vsel %vm602, %v1253, -inf
    %1264 = vmax.xlane.f32.xlu0 %v1263
    %v1265 = vpop.xlane.xlu0 %1264
    %v1266 = vsub.f32 %v1250, %v1256
    %v1267 = vsub.f32 %v1251, %v1259
    %v1268 = vsub.f32 %v1252, %v1262
    %v1269 = vsub.f32 %v1253, %v1265
    %v1270 = vmul.f32 %v1266, 1.442695
    %v1271 = vpow.pop %v1270
    %v1272 = vmul.f32 %v1267, 1.442695
    %v1273 = vpow.pop %v1272
    %v1274 = vmul.f32 %v1268, 1.442695
    %v1275 = vpow.pop %v1274
    %v1276 = vmul.f32 %v1269, 1.442695
    %v1277 = vpow.pop %v1276
    %v1278 = vsel %vm602, %v1271, 0.0
    %1279 = vadd.xlane.f32.xlu0 %v1278
    %v1280 = vpop.xlane.xlu0 %1279
    %v1281 = vsel %vm602, %v1273, 0.0
    %1282 = vadd.xlane.f32.xlu0 %v1281
    %v1283 = vpop.xlane.xlu0 %1282
    %v1284 = vsel %vm602, %v1275, 0.0
    %1285 = vadd.xlane.f32.xlu0 %v1284
    %v1286 = vpop.xlane.xlu0 %1285
    %v1287 = vsel %vm602, %v1277, 0.0
    %1288 = vadd.xlane.f32.xlu0 %v1287
    %v1289 = vpop.xlane.xlu0 %1288
    %v1290 = vrcp.pop %v1280
    %v1291 = vrcp.pop %v1283
    %v1292 = vrcp.pop %v1286
    %v1293 = vrcp.pop %v1289
    %v1294 = vmul.f32 %v1271, %v1290
    %v1295 = vmul.f32 %v1273, %v1291
    %v1296 = vmul.f32 %v1275, %v1292
    %v1297 = vmul.f32 %v1277, %v1293
    %v1299 = vsel %vm602, %v1294, 0
    %1301 = vmatprep.subr.mxu0 0.0
    %1302 = vmatpush1.msra.mxu0 %v951
    %1303 = vmatprep.subr.mxu0 0.0
    %1304 = vmatpush1.msra.mxu0 0.0
    %1305 = vmatprep.subr.mxu0 0.0
    %1306 = vmatpush1.msra.mxu0 0.0
    %1307 = vmatprep.subr.mxu0 0.0
    %1308 = vmatpush1.msra.mxu0 0.0
    %1309 = vmatprep.subr.mxu0 0.0
    %1310 = vmatpush1.msra.mxu0 0.0
    %1311 = vmatprep.subr.mxu0 0.0
    %1312 = vmatpush1.msra.mxu0 0.0
    %1313 = vmatprep.subr.mxu0 0.0
    %1314 = vmatpush1.msra.mxu0 0.0
    %1315 = vmatprep.subr.mxu0 0.0
    %1316 = vmatpush1.msra.mxu0 0.0
    %1317 = vmatprep.subr.mxu0 0.0
    %1318 = vmatpush1.msra.mxu0 0.0
    %1319 = vmatprep.subr.mxu0 0.0
    %1320 = vmatpush1.msra.mxu0 0.0
    %1321 = vmatprep.subr.mxu0 0.0
    %1322 = vmatpush1.msra.mxu0 0.0
    %1323 = vmatprep.subr.mxu0 0.0
    %1324 = vmatpush1.msra.mxu0 0.0
    %1325 = vmatprep.subr.mxu0 0.0
    %1326 = vmatpush1.msra.mxu0 0.0
    %1327 = vmatprep.subr.mxu0 0.0
    %1328 = vmatpush1.msra.mxu0 0.0
    %1329 = vmatprep.subr.mxu0 0.0
    %1330 = vmatpush1.msra.mxu0 0.0
    %1331 = vmatprep.subr.mxu0 0.0
    %1332 = vmatpush1.msra.mxu0 0.0
    %1333 = vmatprep.subr.mxu0 0.0
    %1334 = vmatpush1.msra.mxu0 0.0
    %1335 = vmatprep.subr.mxu0 0.0
    %1336 = vmatpush1.msra.mxu0 0.0
    %1337 = vmatprep.subr.mxu0 0.0
    %1338 = vmatpush1.msra.mxu0 0.0
    %1339 = vmatprep.subr.mxu0 0.0
    %1340 = vmatpush1.msra.mxu0 0.0
    %1341 = vmatprep.subr.mxu0 0.0
    %1342 = vmatpush1.msra.mxu0 0.0
    %1343 = vmatprep.subr.mxu0 0.0
    %1344 = vmatpush1.msra.mxu0 0.0
    %1345 = vmatprep.subr.mxu0 0.0
    %1346 = vmatpush1.msra.mxu0 0.0
    %1347 = vmatprep.subr.mxu0 0.0
    %1348 = vmatpush1.msra.mxu0 0.0
    %1349 = vmatprep.subr.mxu0 0.0
    %1350 = vmatpush1.msra.mxu0 0.0
    %1351 = vmatprep.subr.mxu0 0.0
    %1352 = vmatpush1.msra.mxu0 0.0
    %1353 = vmatprep.subr.mxu0 0.0
    %1354 = vmatpush1.msra.mxu0 0.0
    %1355 = vmatprep.subr.mxu0 0.0
    %1356 = vmatpush1.msra.mxu0 0.0
    %1357 = vmatprep.subr.mxu0 0.0
    %1358 = vmatpush1.msra.mxu0 0.0
    %1359 = vmatprep.subr.mxu0 0.0
    %1360 = vmatpush1.msra.mxu0 0.0
    %1361 = vmatprep.subr.mxu0 0.0
    %1362 = vmatpush1.msra.mxu0 0.0
    %1363 = vmatprep.subr.mxu0 0.0
    %1364 = vmatpush1.msra.mxu0 0.0
    %1365 = vmatprep.mubr.f32.mxu0 0.0
    %1366 = vmatmul.mubr.f32.gmra.mrb[0].mxu0 %v1299
    %v1367 = vpop.f32.mrb[0].mxu0
    %v1368 = vadd.f32 0.0, %v1367
    %v1369 = vpop.f32.mrb[0].mxu0
    %1370 = vdwg.mxu0
    %v1372 = vsel %vm602, %v1295, 0
    %1374 = vmatprep.subr.mxu0 0.0
    %1375 = vmatpush1.msra.mxu0 %v952
    %1376 = vmatprep.subr.mxu0 0.0
    %1377 = vmatpush1.msra.mxu0 0.0
    %1378 = vmatprep.subr.mxu0 0.0
    %1379 = vmatpush1.msra.mxu0 0.0
    %1380 = vmatprep.subr.mxu0 0.0
    %1381 = vmatpush1.msra.mxu0 0.0
    %1382 = vmatprep.subr.mxu0 0.0
    %1383 = vmatpush1.msra.mxu0 0.0
    %1384 = vmatprep.subr.mxu0 0.0
    %1385 = vmatpush1.msra.mxu0 0.0
    %1386 = vmatprep.subr.mxu0 0.0
    %1387 = vmatpush1.msra.mxu0 0.0
    %1388 = vmatprep.subr.mxu0 0.0
    %1389 = vmatpush1.msra.mxu0 0.0
    %1390 = vmatprep.subr.mxu0 0.0
    %1391 = vmatpush1.msra.mxu0 0.0
    %1392 = vmatprep.subr.mxu0 0.0
    %1393 = vmatpush1.msra.mxu0 0.0
    %1394 = vmatprep.subr.mxu0 0.0
    %1395 = vmatpush1.msra.mxu0 0.0
    %1396 = vmatprep.subr.mxu0 0.0
    %1397 = vmatpush1.msra.mxu0 0.0
    %1398 = vmatprep.subr.mxu0 0.0
    %1399 = vmatpush1.msra.mxu0 0.0
    %1400 = vmatprep.subr.mxu0 0.0
    %1401 = vmatpush1.msra.mxu0 0.0
    %1402 = vmatprep.subr.mxu0 0.0
    %1403 = vmatpush1.msra.mxu0 0.0
    %1404 = vmatprep.subr.mxu0 0.0
    %1405 = vmatpush1.msra.mxu0 0.0
    %1406 = vmatprep.subr.mxu0 0.0
    %1407 = vmatpush1.msra.mxu0 0.0
    %1408 = vmatprep.subr.mxu0 0.0
    %1409 = vmatpush1.msra.mxu0 0.0
    %1410 = vmatprep.subr.mxu0 0.0
    %1411 = vmatpush1.msra.mxu0 0.0
    %1412 = vmatprep.subr.mxu0 0.0
    %1413 = vmatpush1.msra.mxu0 0.0
    %1414 = vmatprep.subr.mxu0 0.0
    %1415 = vmatpush1.msra.mxu0 0.0
    %1416 = vmatprep.subr.mxu0 0.0
    %1417 = vmatpush1.msra.mxu0 0.0
    %1418 = vmatprep.subr.mxu0 0.0
    %1419 = vmatpush1.msra.mxu0 0.0
    %1420 = vmatprep.subr.mxu0 0.0
    %1421 = vmatpush1.msra.mxu0 0.0
    %1422 = vmatprep.subr.mxu0 0.0
    %1423 = vmatpush1.msra.mxu0 0.0
    %1424 = vmatprep.subr.mxu0 0.0
    %1425 = vmatpush1.msra.mxu0 0.0
    %1426 = vmatprep.subr.mxu0 0.0
    %1427 = vmatpush1.msra.mxu0 0.0
    %1428 = vmatprep.subr.mxu0 0.0
    %1429 = vmatpush1.msra.mxu0 0.0
    %1430 = vmatprep.subr.mxu0 0.0
    %1431 = vmatpush1.msra.mxu0 0.0
    %1432 = vmatprep.subr.mxu0 0.0
    %1433 = vmatpush1.msra.mxu0 0.0
    %1434 = vmatprep.subr.mxu0 0.0
    %1435 = vmatpush1.msra.mxu0 0.0
    %1436 = vmatprep.subr.mxu0 0.0
    %1437 = vmatpush1.msra.mxu0 0.0
    %1438 = vmatprep.mubr.f32.mxu0 0.0
    %1439 = vmatmul.mubr.f32.gmra.mrb[0].mxu0 %v1372
    %v1440 = vpop.f32.mrb[0].mxu0
    %v1441 = vadd.f32 0.0, %v1440
    %v1442 = vpop.f32.mrb[0].mxu0
    %1443 = vdwg.mxu0
    %v1445 = vsel %vm602, %v1296, 0
    %1447 = vmatprep.subr.mxu0 0.0
    %1448 = vmatpush1.msra.mxu0 %v953
    %1449 = vmatprep.subr.mxu0 0.0
    %1450 = vmatpush1.msra.mxu0 0.0
    %1451 = vmatprep.subr.mxu0 0.0
    %1452 = vmatpush1.msra.mxu0 0.0
    %1453 = vmatprep.subr.mxu0 0.0
    %1454 = vmatpush1.msra.mxu0 0.0
    %1455 = vmatprep.subr.mxu0 0.0
    %1456 = vmatpush1.msra.mxu0 0.0
    %1457 = vmatprep.subr.mxu0 0.0
    %1458 = vmatpush1.msra.mxu0 0.0
    %1459 = vmatprep.subr.mxu0 0.0
    %1460 = vmatpush1.msra.mxu0 0.0
    %1461 = vmatprep.subr.mxu0 0.0
    %1462 = vmatpush1.msra.mxu0 0.0
    %1463 = vmatprep.subr.mxu0 0.0
    %1464 = vmatpush1.msra.mxu0 0.0
    %1465 = vmatprep.subr.mxu0 0.0
    %1466 = vmatpush1.msra.mxu0 0.0
    %1467 = vmatprep.subr.mxu0 0.0
    %1468 = vmatpush1.msra.mxu0 0.0
    %1469 = vmatprep.subr.mxu0 0.0
    %1470 = vmatpush1.msra.mxu0 0.0
    %1471 = vmatprep.subr.mxu0 0.0
    %1472 = vmatpush1.msra.mxu0 0.0
    %1473 = vmatprep.subr.mxu0 0.0
    %1474 = vmatpush1.msra.mxu0 0.0
    %1475 = vmatprep.subr.mxu0 0.0
    %1476 = vmatpush1.msra.mxu0 0.0
    %1477 = vmatprep.subr.mxu0 0.0
    %1478 = vmatpush1.msra.mxu0 0.0
    %1479 = vmatprep.subr.mxu0 0.0
    %1480 = vmatpush1.msra.mxu0 0.0
    %1481 = vmatprep.subr.mxu0 0.0
    %1482 = vmatpush1.msra.mxu0 0.0
    %1483 = vmatprep.subr.mxu0 0.0
    %1484 = vmatpush1.msra.mxu0 0.0
    %1485 = vmatprep.subr.mxu0 0.0
    %1486 = vmatpush1.msra.mxu0 0.0
    %1487 = vmatprep.subr.mxu0 0.0
    %1488 = vmatpush1.msra.mxu0 0.0
    %1489 = vmatprep.subr.mxu0 0.0
    %1490 = vmatpush1.msra.mxu0 0.0
    %1491 = vmatprep.subr.mxu0 0.0
    %1492 = vmatpush1.msra.mxu0 0.0
    %1493 = vmatprep.subr.mxu0 0.0
    %1494 = vmatpush1.msra.mxu0 0.0
    %1495 = vmatprep.subr.mxu0 0.0
    %1496 = vmatpush1.msra.mxu0 0.0
    %1497 = vmatprep.subr.mxu0 0.0
    %1498 = vmatpush1.msra.mxu0 0.0
    %1499 = vmatprep.subr.mxu0 0.0
    %1500 = vmatpush1.msra.mxu0 0.0
    %1501 = vmatprep.subr.mxu0 0.0
    %1502 = vmatpush1.msra.mxu0 0.0
    %1503 = vmatprep.subr.mxu0 0.0
    %1504 = vmatpush1.msra.mxu0 0.0
    %1505 = vmatprep.subr.mxu0 0.0
    %1506 = vmatpush1.msra.mxu0 0.0
    %1507 = vmatprep.subr.mxu0 0.0
    %1508 = vmatpush1.msra.mxu0 0.0
    %1509 = vmatprep.subr.mxu0 0.0
    %1510 = vmatpush1.msra.mxu0 0.0
    %1511 = vmatprep.mubr.f32.mxu0 0.0
    %1512 = vmatmul.mubr.f32.gmra.mrb[0].mxu0 %v1445
    %v1513 = vpop.f32.mrb[0].mxu0
    %v1514 = vadd.f32 0.0, %v1513
    %v1515 = vpop.f32.mrb[0].mxu0
    %1516 = vdwg.mxu0
    %v1518 = vsel %vm602, %v1297, 0
    %1520 = vmatprep.subr.mxu0 0.0
    %1521 = vmatpush1.msra.mxu0 %v954
    %1522 = vmatprep.subr.mxu0 0.0
    %1523 = vmatpush1.msra.mxu0 0.0
    %1524 = vmatprep.subr.mxu0 0.0
    %1525 = vmatpush1.msra.mxu0 0.0
    %1526 = vmatprep.subr.mxu0 0.0
    %1527 = vmatpush1.msra.mxu0 0.0
    %1528 = vmatprep.subr.mxu0 0.0
    %1529 = vmatpush1.msra.mxu0 0.0
    %1530 = vmatprep.subr.mxu0 0.0
    %1531 = vmatpush1.msra.mxu0 0.0
    %1532 = vmatprep.subr.mxu0 0.0
    %1533 = vmatpush1.msra.mxu0 0.0
    %1534 = vmatprep.subr.mxu0 0.0
    %1535 = vmatpush1.msra.mxu0 0.0
    %1536 = vmatprep.subr.mxu0 0.0
    %1537 = vmatpush1.msra.mxu0 0.0
    %1538 = vmatprep.subr.mxu0 0.0
    %1539 = vmatpush1.msra.mxu0 0.0
    %1540 = vmatprep.subr.mxu0 0.0
    %1541 = vmatpush1.msra.mxu0 0.0
    %1542 = vmatprep.subr.mxu0 0.0
    %1543 = vmatpush1.msra.mxu0 0.0
    %1544 = vmatprep.subr.mxu0 0.0
    %1545 = vmatpush1.msra.mxu0 0.0
    %1546 = vmatprep.subr.mxu0 0.0
    %1547 = vmatpush1.msra.mxu0 0.0
    %1548 = vmatprep.subr.mxu0 0.0
    %1549 = vmatpush1.msra.mxu0 0.0
    %1550 = vmatprep.subr.mxu0 0.0
    %1551 = vmatpush1.msra.mxu0 0.0
    %1552 = vmatprep.subr.mxu0 0.0
    %1553 = vmatpush1.msra.mxu0 0.0
    %1554 = vmatprep.subr.mxu0 0.0
    %1555 = vmatpush1.msra.mxu0 0.0
    %1556 = vmatprep.subr.mxu0 0.0
    %1557 = vmatpush1.msra.mxu0 0.0
    %1558 = vmatprep.subr.mxu0 0.0
    %1559 = vmatpush1.msra.mxu0 0.0
    %1560 = vmatprep.subr.mxu0 0.0
    %1561 = vmatpush1.msra.mxu0 0.0
    %1562 = vmatprep.subr.mxu0 0.0
    %1563 = vmatpush1.msra.mxu0 0.0
    %1564 = vmatprep.subr.mxu0 0.0
    %1565 = vmatpush1.msra.mxu0 0.0
    %1566 = vmatprep.subr.mxu0 0.0
    %1567 = vmatpush1.msra.mxu0 0.0
    %1568 = vmatprep.subr.mxu0 0.0
    %1569 = vmatpush1.msra.mxu0 0.0
    %1570 = vmatprep.subr.mxu0 0.0
    %1571 = vmatpush1.msra.mxu0 0.0
    %1572 = vmatprep.subr.mxu0 0.0
    %1573 = vmatpush1.msra.mxu0 0.0
    %1574 = vmatprep.subr.mxu0 0.0
    %1575 = vmatpush1.msra.mxu0 0.0
    %1576 = vmatprep.subr.mxu0 0.0
    %1577 = vmatpush1.msra.mxu0 0.0
    %1578 = vmatprep.subr.mxu0 0.0
    %1579 = vmatpush1.msra.mxu0 0.0
    %1580 = vmatprep.subr.mxu0 0.0
    %1581 = vmatpush1.msra.mxu0 0.0
    %1582 = vmatprep.subr.mxu0 0.0
    %1583 = vmatpush1.msra.mxu0 0.0
    %1584 = vmatprep.mubr.f32.mxu0 0.0
    %1585 = vmatmul.mubr.f32.gmra.mrb[0].mxu0 %v1518
    %v1586 = vpop.f32.mrb[0].mxu0
    %v1587 = vadd.f32 0.0, %v1586
    %v1588 = vpop.f32.mrb[0].mxu0
    %1589 = vdwg.mxu0
    %v1590 = vsel %vm59, %v1368, 0.0
    %v1591 = vsel %vm59, %v1441, 0.0
    %v1592 = vadd.f32 %v1590, %v1591
    %v1593 = vsel %vm59, %v1514, 0.0
    %v1594 = vadd.f32 %v1592, %v1593
    %v1595 = vsel %vm59, %v1587, 0.0
    %v1596 = vadd.f32 %v1594, %v1595
    %1597 = vst.msk [vmem:[#allocation2 + $0x8] sm:$0xff] %vm59, %v1596
    %v1598 = vld [vmem:[%s5] sm:$0x1]
    %v1599 = vld [vmem:[%s5 + $0x1] sm:$0x1]
    %v1600 = vld [vmem:[%s5 + $0x2] sm:$0x1]
    %v1601 = vld [vmem:[%s5 + $0x3] sm:$0x1]
    %v1602 = vld [vmem:[%s5 + $0x4] sm:$0x1]
    %v1603 = vld [vmem:[%s5 + $0x5] sm:$0x1]
    %v1604 = vld [vmem:[%s5 + $0x6] sm:$0x1]
    %v1605 = vld [vmem:[#allocation2] sm:$0xff]
    %v1606 = vld [vmem:[#allocation2 + $0x8] sm:$0xff]
    %v1607 = vlaneseq
    %v1608 = vshrl.u32 %v1607, 7
    %v1609 = vsub.s32 0, %v1608
    %v1610 = vrot.slane %v1598, %v1609
    %v1612 = vsel %vm59, %v1605, 0
    %v1615 = vsel %vm59, %v1606, 0
    %1617 = vmatprep.subr.mxu0 0.0
    %1618 = vmatpush1.msra.mxu0 %v55
    %1619 = vmatprep.subr.mxu0 0.0
    %1620 = vmatpush1.msra.mxu0 %v56
    %1621 = vmatprep.subr.mxu0 0.0
    %1622 = vmatpush1.msra.mxu0 %v57
    %1623 = vmatprep.subr.mxu0 0.0
    %1624 = vmatpush1.msra.mxu0 %v58
    %1625 = vmatprep.subr.mxu0 0.0
    %1626 = vmatpush1.msra.mxu0 0.0
    %1627 = vmatprep.subr.mxu0 0.0
    %1628 = vmatpush1.msra.mxu0 0.0
    %1629 = vmatprep.subr.mxu0 0.0
    %1630 = vmatpush1.msra.mxu0 0.0
    %1631 = vmatprep.subr.mxu0 0.0
    %1632 = vmatpush1.msra.mxu0 0.0
    %1633 = vmatprep.subr.mxu0 0.0
    %1634 = vmatpush1.msra.mxu0 0.0
    %1635 = vmatprep.subr.mxu0 0.0
    %1636 = vmatpush1.msra.mxu0 0.0
    %1637 = vmatprep.subr.mxu0 0.0
    %1638 = vmatpush1.msra.mxu0 0.0
    %1639 = vmatprep.subr.mxu0 0.0
    %1640 = vmatpush1.msra.mxu0 0.0
    %1641 = vmatprep.subr.mxu0 0.0
    %1642 = vmatpush1.msra.mxu0 0.0
    %1643 = vmatprep.subr.mxu0 0.0
    %1644 = vmatpush1.msra.mxu0 0.0
    %1645 = vmatprep.subr.mxu0 0.0
    %1646 = vmatpush1.msra.mxu0 0.0
    %1647 = vmatprep.subr.mxu0 0.0
    %1648 = vmatpush1.msra.mxu0 0.0
    %1649 = vmatprep.subr.mxu0 0.0
    %1650 = vmatpush1.msra.mxu0 0.0
    %1651 = vmatprep.subr.mxu0 0.0
    %1652 = vmatpush1.msra.mxu0 0.0
    %1653 = vmatprep.subr.mxu0 0.0
    %1654 = vmatpush1.msra.mxu0 0.0
    %1655 = vmatprep.subr.mxu0 0.0
    %1656 = vmatpush1.msra.mxu0 0.0
    %1657 = vmatprep.subr.mxu0 0.0
    %1658 = vmatpush1.msra.mxu0 0.0
    %1659 = vmatprep.subr.mxu0 0.0
    %1660 = vmatpush1.msra.mxu0 0.0
    %1661 = vmatprep.subr.mxu0 0.0
    %1662 = vmatpush1.msra.mxu0 0.0
    %1663 = vmatprep.subr.mxu0 0.0
    %1664 = vmatpush1.msra.mxu0 0.0
    %1665 = vmatprep.subr.mxu0 0.0
    %1666 = vmatpush1.msra.mxu0 0.0
    %1667 = vmatprep.subr.mxu0 0.0
    %1668 = vmatpush1.msra.mxu0 0.0
    %1669 = vmatprep.subr.mxu0 0.0
    %1670 = vmatpush1.msra.mxu0 0.0
    %1671 = vmatprep.subr.mxu0 0.0
    %1672 = vmatpush1.msra.mxu0 0.0
    %1673 = vmatprep.subr.mxu0 0.0
    %1674 = vmatpush1.msra.mxu0 0.0
    %1675 = vmatprep.subr.mxu0 0.0
    %1676 = vmatpush1.msra.mxu0 0.0
    %1677 = vmatprep.subr.mxu0 0.0
    %1678 = vmatpush1.msra.mxu0 0.0
    %1679 = vmatprep.subr.mxu0 0.0
    %1680 = vmatpush1.msra.mxu0 0.0
    %1681 = vmatprep.mubr.f32.mxu0 0.0
    %1682 = vmatmul.mubr.f32.gmra.mrb[0].mxu0 %v1612
    %v1683 = vpop.f32.mrb[0].mxu0
    %v1684 = vadd.f32 %v1610, %v1683
    %v1685 = vpop.f32.mrb[0].mxu0
    %1686 = vmatprep.mubr.f32.mxu0 0.0
    %1687 = vmatmul.mubr.f32.gmra.mrb[0].mxu0 %v1615
    %v1688 = vpop.f32.mrb[0].mxu0
    %v1689 = vadd.f32 %v1610, %v1688
    %v1690 = vpop.f32.mrb[0].mxu0
    %1691 = vdwg.mxu0
    %v1692 = vadd.f32 %v38, %v1684
    %v1693 = vadd.f32 %v39, %v1689
    %v1694 = vsel %vm59, %v1692, 0.0
    %1695 = vadd.xlane.f32.xlu0 %v1694
    %v1696 = vpop.xlane.xlu0 %1695
    %v1697 = vsel %vm59, %v1693, 0.0
    %1698 = vadd.xlane.f32.xlu0 %v1697
    %v1699 = vpop.xlane.xlu0 %1698
    %v1700 = vrcp.pop 32.0
    %v1701 = vmul.f32 %v1696, %v1700
    %v1702 = vmul.f32 %v1699, %v1700
    %v1703 = vsub.f32 %v1692, %v1701
    %v1704 = vsub.f32 %v1693, %v1702
    %v1705 = vmul.f32 %v1703, %v1703
    %v1706 = vmul.f32 %v1704, %v1704
    %v1707 = vsel %vm59, %v1705, 0.0
    %1708 = vadd.xlane.f32.xlu0 %v1707
    %v1709 = vpop.xlane.xlu0 %1708
    %v1710 = vsel %vm59, %v1706, 0.0
    %1711 = vadd.xlane.f32.xlu0 %v1710
    %v1712 = vpop.xlane.xlu0 %1711
    %v1713 = vmul.f32 %v1709, %v1700
    %v1714 = vmul.f32 %v1712, %v1700
    %v1715 = vadd.f32 %v1713, 1e-05
    %v1716 = vadd.f32 %v1714, 1e-05
    %v1717 = vrsqrt.pop %v1715
    %v1718 = vrsqrt.pop %v1716
    %v1719 = vmul.f32 %v1703, %v1717
    %v1720 = vmul.f32 %v1704, %v1718
    %v1721 = vlaneseq
    %v1722 = vshrl.u32 %v1721, 7
    %v1723 = vsub.s32 0, %v1722
    %v1724 = vrot.slane %v1599, %v1723
    %v1725 = vmul.f32 %v1719, %v1724
    %v1726 = vmul.f32 %v1720, %v1724
    %v1727 = vlaneseq
    %v1728 = vshrl.u32 %v1727, 7
    %v1729 = vsub.s32 0, %v1728
    %v1730 = vrot.slane %v1600, %v1729
    %v1731 = vadd.f32 %v1725, %v1730
    %v1732 = vadd.f32 %v1726, %v1730
    %v1733 = vld [vmem:[%s2] sm:$0xff]
    %v1734 = vld [vmem:[%s2 + $0x8] sm:$0xff]
    %v1735 = vld [vmem:[%s2 + $0x10] sm:$0xff]
    %v1736 = vld [vmem:[%s2 + $0x18] sm:$0xff]
    %v1737 = vlaneseq
    %v1738 = vshrl.u32 %v1737, 7
    %v1739 = vsub.s32 0, %v1738
    %v1740 = vrot.slane %v1601, %v1739
    %v1742 = vsel %vm59, %v1731, 0
    %v1745 = vsel %vm59, %v1732, 0
    %1747 = vmatprep.subr.mxu0 0.0
    %1748 = vmatpush1.msra.mxu0 %v1733
    %1749 = vmatprep.subr.mxu0 0.0
    %1750 = vmatpush1.msra.mxu0 %v1734
    %1751 = vmatprep.subr.mxu0 0.0
    %1752 = vmatpush1.msra.mxu0 %v1735
    %1753 = vmatprep.subr.mxu0 0.0
    %1754 = vmatpush1.msra.mxu0 %v1736
    %1755 = vmatprep.subr.mxu0 0.0
    %1756 = vmatpush1.msra.mxu0 0.0
    %1757 = vmatprep.subr.mxu0 0.0
    %1758 = vmatpush1.msra.mxu0 0.0
    %1759 = vmatprep.subr.mxu0 0.0
    %1760 = vmatpush1.msra.mxu0 0.0
    %1761 = vmatprep.subr.mxu0 0.0
    %1762 = vmatpush1.msra.mxu0 0.0
    %1763 = vmatprep.subr.mxu0 0.0
    %1764 = vmatpush1.msra.mxu0 0.0
    %1765 = vmatprep.subr.mxu0 0.0
    %1766 = vmatpush1.msra.mxu0 0.0
    %1767 = vmatprep.subr.mxu0 0.0
    %1768 = vmatpush1.msra.mxu0 0.0
    %1769 = vmatprep.subr.mxu0 0.0
    %1770 = vmatpush1.msra.mxu0 0.0
    %1771 = vmatprep.subr.mxu0 0.0
    %1772 = vmatpush1.msra.mxu0 0.0
    %1773 = vmatprep.subr.mxu0 0.0
    %1774 = vmatpush1.msra.mxu0 0.0
    %1775 = vmatprep.subr.mxu0 0.0
    %1776 = vmatpush1.msra.mxu0 0.0
    %1777 = vmatprep.subr.mxu0 0.0
    %1778 = vmatpush1.msra.mxu0 0.0
    %1779 = vmatprep.subr.mxu0 0.0
    %1780 = vmatpush1.msra.mxu0 0.0
    %1781 = vmatprep.subr.mxu0 0.0
    %1782 = vmatpush1.msra.mxu0 0.0
    %1783 = vmatprep.subr.mxu0 0.0
    %1784 = vmatpush1.msra.mxu0 0.0
    %1785 = vmatprep.subr.mxu0 0.0
    %1786 = vmatpush1.msra.mxu0 0.0
    %1787 = vmatprep.subr.mxu0 0.0
    %1788 = vmatpush1.msra.mxu0 0.0
    %1789 = vmatprep.subr.mxu0 0.0
    %1790 = vmatpush1.msra.mxu0 0.0
    %1791 = vmatprep.subr.mxu0 0.0
    %1792 = vmatpush1.msra.mxu0 0.0
    %1793 = vmatprep.subr.mxu0 0.0
    %1794 = vmatpush1.msra.mxu0 0.0
    %1795 = vmatprep.subr.mxu0 0.0
    %1796 = vmatpush1.msra.mxu0 0.0
    %1797 = vmatprep.subr.mxu0 0.0
    %1798 = vmatpush1.msra.mxu0 0.0
    %1799 = vmatprep.subr.mxu0 0.0
    %1800 = vmatpush1.msra.mxu0 0.0
    %1801 = vmatprep.subr.mxu0 0.0
    %1802 = vmatpush1.msra.mxu0 0.0
    %1803 = vmatprep.subr.mxu0 0.0
    %1804 = vmatpush1.msra.mxu0 0.0
    %1805 = vmatprep.subr.mxu0 0.0
    %1806 = vmatpush1.msra.mxu0 0.0
    %1807 = vmatprep.subr.mxu0 0.0
    %1808 = vmatpush1.msra.mxu0 0.0
    %1809 = vmatprep.subr.mxu0 0.0
    %1810 = vmatpush1.msra.mxu0 0.0
    %1811 = vmatprep.mubr.f32.mxu0 0.0
    %1812 = vmatmul.mubr.f32.gmra.mrb[0].mxu0 %v1742
    %v1813 = vpop.f32.mrb[0].mxu0
    %v1814 = vadd.f32 %v1740, %v1813
    %v1815 = vpop.f32.mrb[0].mxu0
    %1816 = vmatprep.mubr.f32.mxu0 0.0
    %1817 = vmatmul.mubr.f32.gmra.mrb[0].mxu0 %v1745
    %v1818 = vpop.f32.mrb[0].mxu0
    %v1819 = vadd.f32 %v1740, %v1818
    %v1820 = vpop.f32.mrb[0].mxu0
    %1821 = vdwg.mxu0
    %v1822 = vmul.f32 %v1814, 0.5
    %v1823 = vmul.f32 %v1819, 0.5
    %v1824 = vmul.f32 %v1814, 0.70710677
    %v1825 = vmul.f32 %v1819, 0.70710677
    %v1826 = verf.f32.pop %v1824
    %v1827 = verf.f32.pop %v1825
    %v1828 = vadd.f32 %v1826, 1.0
    %v1829 = vadd.f32 %v1827, 1.0
    %v1830 = vmul.f32 %v1822, %v1828
    %v1831 = vmul.f32 %v1823, %v1829
    %v1832 = vld [vmem:[%s3] sm:$0xff]
    %v1833 = vld [vmem:[%s3 + $0x8] sm:$0xff]
    %v1834 = vld [vmem:[%s3 + $0x10] sm:$0xff]
    %v1835 = vld [vmem:[%s3 + $0x18] sm:$0xff]
    %v1836 = vld [vmem:[%s3 + $0x20] sm:$0xff]
    %v1837 = vld [vmem:[%s3 + $0x28] sm:$0xff]
    %v1838 = vld [vmem:[%s3 + $0x30] sm:$0xff]
    %v1839 = vld [vmem:[%s3 + $0x38] sm:$0xff]
    %v1840 = vlaneseq
    %v1841 = vshrl.u32 %v1840, 7
    %v1842 = vsub.s32 0, %v1841
    %v1843 = vrot.slane %v1602, %v1842
    %vm1844 = vcmask 523264
    %v1846 = vsel %vm1844, %v1830, 0
    %v1849 = vsel %vm1844, %v1831, 0
    %1851 = vmatprep.subr.mxu0 0.0
    %1852 = vmatpush1.msra.mxu0 %v1832
    %1853 = vmatprep.subr.mxu0 0.0
    %1854 = vmatpush1.msra.mxu0 %v1833
    %1855 = vmatprep.subr.mxu0 0.0
    %1856 = vmatpush1.msra.mxu0 %v1834
    %1857 = vmatprep.subr.mxu0 0.0
    %1858 = vmatpush1.msra.mxu0 %v1835
    %1859 = vmatprep.subr.mxu0 0.0
    %1860 = vmatpush1.msra.mxu0 %v1836
    %1861 = vmatprep.subr.mxu0 0.0
    %1862 = vmatpush1.msra.mxu0 %v1837
    %1863 = vmatprep.subr.mxu0 0.0
    %1864 = vmatpush1.msra.mxu0 %v1838
    %1865 = vmatprep.subr.mxu0 0.0
    %1866 = vmatpush1.msra.mxu0 %v1839
    %1867 = vmatprep.subr.mxu0 0.0
    %1868 = vmatpush1.msra.mxu0 0.0
    %1869 = vmatprep.subr.mxu0 0.0
    %1870 = vmatpush1.msra.mxu0 0.0
    %1871 = vmatprep.subr.mxu0 0.0
    %1872 = vmatpush1.msra.mxu0 0.0
    %1873 = vmatprep.subr.mxu0 0.0
    %1874 = vmatpush1.msra.mxu0 0.0
    %1875 = vmatprep.subr.mxu0 0.0
    %1876 = vmatpush1.msra.mxu0 0.0
    %1877 = vmatprep.subr.mxu0 0.0
    %1878 = vmatpush1.msra.mxu0 0.0
    %1879 = vmatprep.subr.mxu0 0.0
    %1880 = vmatpush1.msra.mxu0 0.0
    %1881 = vmatprep.subr.mxu0 0.0
    %1882 = vmatpush1.msra.mxu0 0.0
    %1883 = vmatprep.subr.mxu0 0.0
    %1884 = vmatpush1.msra.mxu0 0.0
    %1885 = vmatprep.subr.mxu0 0.0
    %1886 = vmatpush1.msra.mxu0 0.0
    %1887 = vmatprep.subr.mxu0 0.0
    %1888 = vmatpush1.msra.mxu0 0.0
    %1889 = vmatprep.subr.mxu0 0.0
    %1890 = vmatpush1.msra.mxu0 0.0
    %1891 = vmatprep.subr.mxu0 0.0
    %1892 = vmatpush1.msra.mxu0 0.0
    %1893 = vmatprep.subr.mxu0 0.0
    %1894 = vmatpush1.msra.mxu0 0.0
    %1895 = vmatprep.subr.mxu0 0.0
    %1896 = vmatpush1.msra.mxu0 0.0
    %1897 = vmatprep.subr.mxu0 0.0
    %1898 = vmatpush1.msra.mxu0 0.0
    %1899 = vmatprep.subr.mxu0 0.0
    %1900 = vmatpush1.msra.mxu0 0.0
    %1901 = vmatprep.subr.mxu0 0.0
    %1902 = vmatpush1.msra.mxu0 0.0
    %1903 = vmatprep.subr.mxu0 0.0
    %1904 = vmatpush1.msra.mxu0 0.0
    %1905 = vmatprep.subr.mxu0 0.0
    %1906 = vmatpush1.msra.mxu0 0.0
    %1907 = vmatprep.subr.mxu0 0.0
    %1908 = vmatpush1.msra.mxu0 0.0
    %1909 = vmatprep.subr.mxu0 0.0
    %1910 = vmatpush1.msra.mxu0 0.0
    %1911 = vmatprep.subr.mxu0 0.0
    %1912 = vmatpush1.msra.mxu0 0.0
    %1913 = vmatprep.subr.mxu0 0.0
    %1914 = vmatpush1.msra.mxu0 0.0
    %1915 = vmatprep.mubr.f32.mxu0 0.0
    %1916 = vmatmul.mubr.f32.gmra.mrb[0].mxu0 %v1846
    %v1917 = vpop.f32.mrb[0].mxu0
    %v1918 = vadd.f32 %v1843, %v1917
    %v1919 = vpop.f32.mrb[0].mxu0
    %1920 = vmatprep.mubr.f32.mxu0 0.0
    %1921 = vmatmul.mubr.f32.gmra.mrb[0].mxu0 %v1849
    %v1922 = vpop.f32.mrb[0].mxu0
    %v1923 = vadd.f32 %v1843, %v1922
    %v1924 = vpop.f32.mrb[0].mxu0
    %1925 = vdwg.mxu0
    %v1926 = vadd.f32 %v1731, %v1918
    %v1927 = vadd.f32 %v1732, %v1923
    %v1928 = vsel %vm59, %v1926, 0.0
    %1929 = vadd.xlane.f32.xlu0 %v1928
    %v1930 = vpop.xlane.xlu0 %1929
    %v1931 = vsel %vm59, %v1927, 0.0
    %1932 = vadd.xlane.f32.xlu0 %v1931
    %v1933 = vpop.xlane.xlu0 %1932
    %v1934 = vmul.f32 %v1930, %v1700
    %v1935 = vmul.f32 %v1933, %v1700
    %v1936 = vsub.f32 %v1926, %v1934
    %v1937 = vsub.f32 %v1927, %v1935
    %v1938 = vmul.f32 %v1936, %v1936
    %v1939 = vmul.f32 %v1937, %v1937
    %v1940 = vsel %vm59, %v1938, 0.0
    %1941 = vadd.xlane.f32.xlu0 %v1940
    %v1942 = vpop.xlane.xlu0 %1941
    %v1943 = vsel %vm59, %v1939, 0.0
    %1944 = vadd.xlane.f32.xlu0 %v1943
    %v1945 = vpop.xlane.xlu0 %1944
    %v1946 = vmul.f32 %v1942, %v1700
    %v1947 = vmul.f32 %v1945, %v1700
    %v1948 = vadd.f32 %v1946, 1e-05
    %v1949 = vadd.f32 %v1947, 1e-05
    %v1950 = vrsqrt.pop %v1948
    %v1951 = vrsqrt.pop %v1949
    %v1952 = vmul.f32 %v1936, %v1950
    %v1953 = vmul.f32 %v1937, %v1951
    %v1954 = vlaneseq
    %v1955 = vshrl.u32 %v1954, 7
    %v1956 = vsub.s32 0, %v1955
    %v1957 = vrot.slane %v1603, %v1956
    %v1958 = vmul.f32 %v1952, %v1957
    %v1959 = vmul.f32 %v1953, %v1957
    %v1960 = vlaneseq
    %v1961 = vshrl.u32 %v1960, 7
    %v1962 = vsub.s32 0, %v1961
    %v1963 = vrot.slane %v1604, %v1962
    %v1964 = vadd.f32 %v1958, %v1963
    %v1965 = vadd.f32 %v1959, %v1963
    %1966 = vst.msk [vmem:[#allocation6] sm:$0xff] %vm59, %v1964
    %1967 = vst.msk [vmem:[#allocation6 + $0x8] sm:$0xff] %vm59, %v1965
    // Predicated region
    $region30: #{tpu_custom_call.1} parent=1 // pred_check
      _
    $region31: #{tpu_custom_call.1} parent=1 // pred_check_branch
      %1969 = sbr.rel (0) target = $region33
    $region32: #{tpu_custom_call.1} parent=1 // pred_region
      %s1971 = ssub.s32 256, 256
      %1972 = vsyncadd [#allocation5], %s1971
      %s1973 = sshll.u32 [#allocation6], 4
      %s1974 = int_to_ptr.vmem [resolvable:$true] %s1973
      %1979 = dma.vmem_to_hbm [thread:$0]  %s1974, 256, %s6, [#allocation5], 128, 128, 8
    $region33: #{tpu_custom_call.1} parent=1 // pred_fallthru
      _
    // Predicated region
    $region34: #{tpu_custom_call.1} parent=1 // pred_check
      _
    $region35: #{tpu_custom_call.1} parent=1 // pred_check_branch
      %1981 = sbr.rel (0) target = $region37
    $region36: #{tpu_custom_call.1} parent=1 // pred_region
      %1982 = dma.done [#allocation5], 256
    $region37: #{tpu_custom_call.1} parent=1 // pred_fallthru
      _
    %1983 = vsyncpa [#allocation4], 1
    %1984 = vsyncpa [#allocation5], 1

</llo_original>
